<compile_context>
chip_gen: v7x
topology: tpu7x:2x2x1
jax: 0.10.0
libtpu: 0.0.40
codegen_flags: <defaults>
</compile_context>

<pallas_src>
import functools
import math

import jax
import jax.numpy as jnp
from jax.experimental import pallas as pl
from jax.experimental.pallas import tpu as pltpu

LEAKY_SLOPE = 0.01                      # LeakyReLU slope inside the coupling MLPs
_HALF_LOG_2PI = 0.5 * math.log(2.0 * math.pi)


def _flow_model_kernel(x_ref, w1_ref, b1_ref, w2_ref, b2_ref,
                       zs_ref, logdet_ref, prior_ref, *, num_flows, d2):
    # Layout: batch on the lane axis (lane-dense); the two coupling halves are
    # separate leading-axis slabs, so the half split / merge is a leading index.
    xa = x_ref[0]                                    # (d2, Tm) first-half feats
    xb = x_ref[1]                                    # (d2, Tm) second-half feats
    tile_m = xa.shape[-1]
    log_det = jnp.zeros((1, tile_m), jnp.float32)

    # Static unroll over flows: parity is resolved at trace time (no blends),
    # per-flow weights are indexed statically, and all flows live in one grid
    # step so the scheduler can overlap them.
    for f in range(num_flows):
        if f % 2 == 0:
            x0, x1 = xa, xb                          # even: condition on 1st half
        else:
            x0, x1 = xb, xa                          # odd: condition on 2nd half

        # Fused s/t MLP — one MXU pass per layer:
        #   layer 1: (2nh, d2) @ (d2, Tm)  -> [h_s ; h_t]
        #   layer 2: block-diag (2d2, 2nh) @ (2nh, Tm) -> [s ; t]
        h = jnp.dot(w1_ref[f], x0, preferred_element_type=jnp.float32) + b1_ref[f]
        h = jnp.where(h > 0, h, LEAKY_SLOPE * h)     # LeakyReLU
        st = jnp.dot(w2_ref[f], h, preferred_element_type=jnp.float32) + b2_ref[f]
        s = st[:d2, :]                               # (d2, Tm) log-scale
        t = st[d2:, :]                               # (d2, Tm) shift

        z1 = jnp.exp(s) * x1 + t                     # transformed half (EUP exp)
        if f % 2 == 0:
            xa, xb = x0, z1                          # first half unchanged
        else:
            xa, xb = z1, x0                          # second half unchanged

        zs_ref[f, 0] = xa                            # record intermediate z
        zs_ref[f, 1] = xb                            # (lane-dense 128-wide stores)
        log_det = log_det + jnp.sum(s, axis=0, keepdims=True)

    logdet_ref[...] = log_det
    # Standard-normal prior log-prob of the final z (NormalizingFlowModel.forward).
    sq = (jnp.sum(xa * xa, axis=0, keepdims=True)
          + jnp.sum(xb * xb, axis=0, keepdims=True))
    prior_ref[...] = -0.5 * sq - (2 * d2) * _HALF_LOG_2PI


def normalizing_flow_model_forward(x, params, *, tile_m=128):
    """Forward of NormalizingFlowModel (affine-coupling flows, N(0, I) prior).

    Returns (zs, prior_logprob, log_det) mirroring the PyTorch module:
      zs            : list of num_flows + 1 arrays, each (m, dim)
      prior_logprob : (m,) float32
      log_det       : (m,) float32
    """
    w1s, b1s, w2s, b2s, w1t, b1t, w2t, b2t = params
    num_flows, d2, nh = w1s.shape
    m, d = x.shape
    assert d == 2 * d2
    tile_m = min(tile_m, m)
    assert m % tile_m == 0, "batch size must be divisible by the batch tile"

    f32 = jnp.float32
    # ---- fuse the s-net and t-net once, outside the kernel ------------------
    # layer 1: [w1s | w1t] along hidden, stored transposed -> (F, 2nh, d2)
    w1f = jnp.swapaxes(jnp.concatenate([w1s, w1t], axis=-1), 1, 2).astype(f32)
    b1f = jnp.swapaxes(jnp.concatenate([b1s, b1t], axis=-1), 1, 2).astype(f32)   # (F, 2nh, 1)
    # layer 2: block-diag(w2s, w2t), stored transposed -> (F, 2d2, 2nh)
    zpad = jnp.zeros((num_flows, d2, nh), f32)
    w2f = jnp.concatenate(
        [jnp.concatenate([jnp.swapaxes(w2s, 1, 2), zpad], axis=-1),
         jnp.concatenate([zpad, jnp.swapaxes(w2t, 1, 2)], axis=-1)],
        axis=1).astype(f32)
    b2f = jnp.swapaxes(jnp.concatenate([b2s, b2t], axis=-1), 1, 2).astype(f32)   # (F, 2d2, 1)

    # ---- lane-dense input layout: batch on lanes, halves as leading slabs ---
    xt = jnp.transpose(x.reshape(m, 2, d2), (1, 2, 0)).astype(f32)               # (2, d2, m)

    kernel = functools.partial(_flow_model_kernel, num_flows=num_flows, d2=d2)
    grid = (m // tile_m,)

    zs_t, logdet, prior_lp = pl.pallas_call(
        kernel,
        out_shape=(
            jax.ShapeDtypeStruct((num_flows, 2, d2, m), f32),   # all intermediate z
            jax.ShapeDtypeStruct((1, m), f32),                  # log|det J|
            jax.ShapeDtypeStruct((1, m), f32),                  # prior log-prob
        ),
        grid_spec=pltpu.PrefetchScalarGridSpec(
            num_scalar_prefetch=0,
            grid=grid,
            in_specs=[
                pl.BlockSpec((2, d2, tile_m), lambda i: (0, 0, i)),          # x slab
                pl.BlockSpec((num_flows, 2 * nh, d2), lambda i: (0, 0, 0)),  # W1 fused
                pl.BlockSpec((num_flows, 2 * nh, 1), lambda i: (0, 0, 0)),   # b1 fused
                pl.BlockSpec((num_flows, 2 * d2, 2 * nh), lambda i: (0, 0, 0)),  # W2 block-diag
                pl.BlockSpec((num_flows, 2 * d2, 1), lambda i: (0, 0, 0)),   # b2 fused
            ],
            out_specs=[
                pl.BlockSpec((num_flows, 2, d2, tile_m), lambda i: (0, 0, 0, i)),
                pl.BlockSpec((1, tile_m), lambda i: (0, i)),
                pl.BlockSpec((1, tile_m), lambda i: (0, i)),
            ],
        ),
        compiler_params=pltpu.CompilerParams(
            dimension_semantics=("parallel",),        # batch axis: megacore on v7x
            vmem_limit_bytes=32 * 1024 * 1024),       # tiles are ~KBs; safe on v5e/v6e/v7x
    )(xt, w1f, b1f, w2f, b2f)

    # Back to module layout (m, dim): columns are [first half | second half].
    zs_flows = jnp.transpose(zs_t, (0, 3, 1, 2)).reshape(num_flows, m, d)
    zs = [x] + [zs_flows[k] for k in range(num_flows)]
    return zs, prior_lp.reshape(m), logdet.reshape(m)


# --------------------------- pure-JAX reference -------------------------------
def _ref_forward(x, params):
    """Unfused, (m, dim)-layout reference of the same flow stack + N(0,I) prior."""
    w1s, b1s, w2s, b2s, w1t, b1t, w2t, b2t = params
    num_flows, d2, _ = w1s.shape
    m, d = x.shape
    ld = jnp.zeros((m,), jnp.float32)
    zs = [x]
    for k in range(num_flows):
        xa, xb = x[:, :d2], x[:, d2:]
        if k % 2 == 1:
            x0, x1 = xb, xa
        else:
            x0, x1 = xa, xb

        def mlp(w1, b1, w2, b2):
            h = x0 @ w1[k] + b1[k][0]
            h = jnp.where(h > 0, h, LEAKY_SLOPE * h)
            return h @ w2[k] + b2[k][0]

        s = mlp(w1s, b1s, w2s, b2s)
        t = mlp(w1t, b1t, w2t, b2t)
        z0, z1 = x0, jnp.exp(s) * x1 + t
        if k % 2 == 1:
            za, zb = z1, z0
        else:
            za, zb = z0, z1
        x = jnp.concatenate([za, zb], axis=1)
        ld = ld + jnp.sum(s, axis=1)
        zs.append(x)
    prior_lp = -0.5 * jnp.sum(x * x, axis=1) - d * _HALF_LOG_2PI
    return zs, prior_lp, ld


def _make_params(key, num_flows, dim, nh):
    # Small init keeps exp(s) from compounding/overflowing across the flow stack
    # (the previous version's large init blew up to inf by flow 3).
    d2 = dim // 2
    keys = jax.random.split(key, 8)
    sw, sb = 0.05, 0.02
    w1s = sw * jax.random.normal(keys[0], (num_flows, d2, nh), jnp.float32)
    b1s = sb * jax.random.normal(keys[1], (num_flows, 1, nh), jnp.float32)
    w2s = sw * jax.random.normal(keys[2], (num_flows, nh, d2), jnp.float32)
    b2s = sb * jax.random.normal(keys[3], (num_flows, 1, d2), jnp.float32)
    w1t = sw * jax.random.normal(keys[4], (num_flows, d2, nh), jnp.float32)
    b1t = sb * jax.random.normal(keys[5], (num_flows, 1, nh), jnp.float32)
    w2t = sw * jax.random.normal(keys[6], (num_flows, nh, d2), jnp.float32)
    b2t = sb * jax.random.normal(keys[7], (num_flows, 1, d2), jnp.float32)
    return (w1s, b1s, w2s, b2s, w1t, b1t, w2t, b2t)


if __name__ == "__main__":
    M, DIM, NH, NUM_FLOWS, TILE_M = 256, 8, 32, 4, 128

    key = jax.random.PRNGKey(0)
    kx, kp = jax.random.split(key)
    x = jax.random.normal(kx, (M, DIM), jnp.float32)
    params = _make_params(kp, NUM_FLOWS, DIM, NH)

    fwd = jax.jit(functools.partial(normalizing_flow_model_forward, tile_m=TILE_M))
    zs, prior_lp, log_det = fwd(x, params)
    jax.block_until_ready(zs[-1])
    jax.block_until_ready(prior_lp)
    jax.block_until_ready(log_det)

    zs_ref, prior_ref, ld_ref = _ref_forward(x, params)
    # Tolerances allow for the default (bf16-pass) TPU matmul precision applied to
    # two differently-fused but mathematically identical computations.
    for a, b in zip(zs, zs_ref):
        assert jnp.allclose(a, b, atol=2e-2, rtol=2e-2), "zs mismatch"
    assert jnp.allclose(log_det, ld_ref, atol=2e-2, rtol=2e-2), "log_det mismatch"
    assert jnp.allclose(prior_lp, prior_ref, atol=5e-2, rtol=5e-2), "prior_logprob mismatch"

    print("KERNEL_OK")
</pallas_src>

<mosaic_0001>
module attributes {stable_mosaic.version = 11 : i64} {
  func.func @_flow_model_kernel(%arg0: i32, %arg1: memref<2x4x128xf32, #tpu.memory_space<vmem>>, %arg2: memref<4x64x4xf32, #tpu.memory_space<vmem>>, %arg3: memref<4x64x1xf32, #tpu.memory_space<vmem>>, %arg4: memref<4x8x64xf32, #tpu.memory_space<vmem>>, %arg5: memref<4x8x1xf32, #tpu.memory_space<vmem>>, %arg6: memref<4x2x4x128xf32, #tpu.memory_space<vmem>>, %arg7: memref<1x128xf32, #tpu.memory_space<vmem>>, %arg8: memref<1x128xf32, #tpu.memory_space<vmem>>) attributes {dimension_semantics = [#tpu.dimension_semantics<parallel>], iteration_bounds = array<i64: 2>, scalar_prefetch = 0 : i64, scratch_operands = 0 : i64, tpu.core_type = #tpu.core_type<tc>, window_params = [{transform_indices = @transform_0, window_bounds = array<i64: 2, 4, 128>}, {pipeline_mode = #tpu.pipeline_mode<synchronous>, transform_indices = @transform_1, window_bounds = array<i64: 4, 64, 4>}, {pipeline_mode = #tpu.pipeline_mode<synchronous>, transform_indices = @transform_2, window_bounds = array<i64: 4, 64, 1>}, {pipeline_mode = #tpu.pipeline_mode<synchronous>, transform_indices = @transform_3, window_bounds = array<i64: 4, 8, 64>}, {pipeline_mode = #tpu.pipeline_mode<synchronous>, transform_indices = @transform_4, window_bounds = array<i64: 4, 8, 1>}, {transform_indices = @transform_5, window_bounds = array<i64: 4, 2, 4, 128>}, {transform_indices = @transform_6, window_bounds = array<i64: 1, 128>}, {transform_indices = @transform_7, window_bounds = array<i64: 1, 128>}]} {
    %c0 = arith.constant 0 : index
    %c0_0 = arith.constant 0 : index
    %c0_1 = arith.constant 0 : index
    %0 = vector.load %arg1[%c0, %c0_0, %c0_1] : memref<2x4x128xf32, #tpu.memory_space<vmem>>, vector<1x4x128xf32>
    %1 = vector.shape_cast %0 : vector<1x4x128xf32> to vector<4x128xf32>
    %c1 = arith.constant 1 : index
    %c0_2 = arith.constant 0 : index
    %c0_3 = arith.constant 0 : index
    %2 = vector.load %arg1[%c1, %c0_2, %c0_3] : memref<2x4x128xf32, #tpu.memory_space<vmem>>, vector<1x4x128xf32>
    %3 = vector.shape_cast %2 : vector<1x4x128xf32> to vector<4x128xf32>
    %cst = arith.constant 0.000000e+00 : f32
    %4 = vector.broadcast %cst : f32 to vector<1x128xf32>
    %c0_4 = arith.constant 0 : index
    %c0_5 = arith.constant 0 : index
    %c0_6 = arith.constant 0 : index
    %5 = vector.load %arg2[%c0_4, %c0_5, %c0_6] : memref<4x64x4xf32, #tpu.memory_space<vmem>>, vector<1x64x4xf32>
    %6 = vector.shape_cast %5 : vector<1x64x4xf32> to vector<64x4xf32>
    %cst_7 = arith.constant dense<0.000000e+00> : vector<64x128xf32>
    %7 = tpu.matmul %6, %1, %cst_7 {dimension_numbers = #tpu.dot_dimension_numbers<[1], [0], [0], [1], [0, 0, 1, 1], [], []>} : vector<64x4xf32>, vector<4x128xf32>, vector<64x128xf32> -> vector<64x128xf32>
    %c0_8 = arith.constant 0 : index
    %c0_9 = arith.constant 0 : index
    %c0_10 = arith.constant 0 : index
    %8 = vector.load %arg3[%c0_8, %c0_9, %c0_10] : memref<4x64x1xf32, #tpu.memory_space<vmem>>, vector<1x64x1xf32>
    %9 = vector.shape_cast %8 : vector<1x64x1xf32> to vector<64x1xf32>
    %10 = vector.broadcast %9 : vector<64x1xf32> to vector<64x128xf32>
    %11 = arith.addf %7, %10 : vector<64x128xf32>
    %cst_11 = arith.constant 0.000000e+00 : f32
    %12 = vector.broadcast %cst_11 : f32 to vector<64x128xf32>
    %13 = arith.cmpf ogt, %11, %12 : vector<64x128xf32>
    %cst_12 = arith.constant 0.00999999977 : f32
    %14 = vector.broadcast %cst_12 : f32 to vector<64x128xf32>
    %15 = arith.mulf %14, %11 : vector<64x128xf32>
    %16 = arith.select %13, %11, %15 : vector<64x128xi1>, vector<64x128xf32>
    %c0_13 = arith.constant 0 : index
    %c0_14 = arith.constant 0 : index
    %c0_15 = arith.constant 0 : index
    %17 = vector.load %arg4[%c0_13, %c0_14, %c0_15] : memref<4x8x64xf32, #tpu.memory_space<vmem>>, vector<1x8x64xf32>
    %18 = vector.shape_cast %17 : vector<1x8x64xf32> to vector<8x64xf32>
    %cst_16 = arith.constant dense<0.000000e+00> : vector<8x128xf32>
    %19 = tpu.matmul %18, %16, %cst_16 {dimension_numbers = #tpu.dot_dimension_numbers<[1], [0], [0], [1], [0, 0, 1, 1], [], []>} : vector<8x64xf32>, vector<64x128xf32>, vector<8x128xf32> -> vector<8x128xf32>
    %c0_17 = arith.constant 0 : index
    %c0_18 = arith.constant 0 : index
    %c0_19 = arith.constant 0 : index
    %20 = vector.load %arg5[%c0_17, %c0_18, %c0_19] : memref<4x8x1xf32, #tpu.memory_space<vmem>>, vector<1x8x1xf32>
    %21 = vector.shape_cast %20 : vector<1x8x1xf32> to vector<8x1xf32>
    %22 = vector.broadcast %21 : vector<8x1xf32> to vector<8x128xf32>
    %23 = arith.addf %19, %22 : vector<8x128xf32>
    %24 = vector.extract_strided_slice %23 {offsets = [0, 0], sizes = [4, 128], strides = [1, 1]} : vector<8x128xf32> to vector<4x128xf32>
    %25 = vector.extract_strided_slice %23 {offsets = [4, 0], sizes = [4, 128], strides = [1, 1]} : vector<8x128xf32> to vector<4x128xf32>
    %26 = math.exp %24 : vector<4x128xf32>
    %27 = arith.mulf %26, %3 : vector<4x128xf32>
    %28 = arith.addf %27, %25 : vector<4x128xf32>
    %c0_20 = arith.constant 0 : index
    %c0_21 = arith.constant 0 : index
    %c0_22 = arith.constant 0 : index
    %c0_23 = arith.constant 0 : index
    %29 = vector.load %arg6[%c0_20, %c0_21, %c0_22, %c0_23] : memref<4x2x4x128xf32, #tpu.memory_space<vmem>>, vector<1x1x4x128xf32>
    %30 = vector.shape_cast %29 : vector<1x1x4x128xf32> to vector<4x128xf32>
    %31 = vector.shape_cast %1 : vector<4x128xf32> to vector<1x1x4x128xf32>
    tpu.vector_store %arg6[%c0_20, %c0_21, %c0_22, %c0_23], %31 {strides = array<i32>} : memref<4x2x4x128xf32, #tpu.memory_space<vmem>>, vector<1x1x4x128xf32>,
    %c0_24 = arith.constant 0 : index
    %c1_25 = arith.constant 1 : index
    %c0_26 = arith.constant 0 : index
    %c0_27 = arith.constant 0 : index
    %32 = vector.load %arg6[%c0_24, %c1_25, %c0_26, %c0_27] : memref<4x2x4x128xf32, #tpu.memory_space<vmem>>, vector<1x1x4x128xf32>
    %33 = vector.shape_cast %32 : vector<1x1x4x128xf32> to vector<4x128xf32>
    %34 = vector.shape_cast %28 : vector<4x128xf32> to vector<1x1x4x128xf32>
    tpu.vector_store %arg6[%c0_24, %c1_25, %c0_26, %c0_27], %34 {strides = array<i32>} : memref<4x2x4x128xf32, #tpu.memory_space<vmem>>, vector<1x1x4x128xf32>,
    %cst_28 = arith.constant dense<0.000000e+00> : vector<128xf32>
    %35 = vector.multi_reduction <add>, %24, %cst_28 [0] : vector<4x128xf32> to vector<128xf32>
    %36 = vector.shape_cast %35 : vector<128xf32> to vector<1x128xf32>
    %37 = arith.addf %4, %36 : vector<1x128xf32>
    %c1_29 = arith.constant 1 : index
    %c0_30 = arith.constant 0 : index
    %c0_31 = arith.constant 0 : index
    %38 = vector.load %arg2[%c1_29, %c0_30, %c0_31] : memref<4x64x4xf32, #tpu.memory_space<vmem>>, vector<1x64x4xf32>
    %39 = vector.shape_cast %38 : vector<1x64x4xf32> to vector<64x4xf32>
    %cst_32 = arith.constant dense<0.000000e+00> : vector<64x128xf32>
    %40 = tpu.matmul %39, %28, %cst_32 {dimension_numbers = #tpu.dot_dimension_numbers<[1], [0], [0], [1], [0, 0, 1, 1], [], []>} : vector<64x4xf32>, vector<4x128xf32>, vector<64x128xf32> -> vector<64x128xf32>
    %c1_33 = arith.constant 1 : index
    %c0_34 = arith.constant 0 : index
    %c0_35 = arith.constant 0 : index
    %41 = vector.load %arg3[%c1_33, %c0_34, %c0_35] : memref<4x64x1xf32, #tpu.memory_space<vmem>>, vector<1x64x1xf32>
    %42 = vector.shape_cast %41 : vector<1x64x1xf32> to vector<64x1xf32>
    %43 = vector.broadcast %42 : vector<64x1xf32> to vector<64x128xf32>
    %44 = arith.addf %40, %43 : vector<64x128xf32>
    %cst_36 = arith.constant 0.000000e+00 : f32
    %45 = vector.broadcast %cst_36 : f32 to vector<64x128xf32>
    %46 = arith.cmpf ogt, %44, %45 : vector<64x128xf32>
    %cst_37 = arith.constant 0.00999999977 : f32
    %47 = vector.broadcast %cst_37 : f32 to vector<64x128xf32>
    %48 = arith.mulf %47, %44 : vector<64x128xf32>
    %49 = arith.select %46, %44, %48 : vector<64x128xi1>, vector<64x128xf32>
    %c1_38 = arith.constant 1 : index
    %c0_39 = arith.constant 0 : index
    %c0_40 = arith.constant 0 : index
    %50 = vector.load %arg4[%c1_38, %c0_39, %c0_40] : memref<4x8x64xf32, #tpu.memory_space<vmem>>, vector<1x8x64xf32>
    %51 = vector.shape_cast %50 : vector<1x8x64xf32> to vector<8x64xf32>
    %cst_41 = arith.constant dense<0.000000e+00> : vector<8x128xf32>
    %52 = tpu.matmul %51, %49, %cst_41 {dimension_numbers = #tpu.dot_dimension_numbers<[1], [0], [0], [1], [0, 0, 1, 1], [], []>} : vector<8x64xf32>, vector<64x128xf32>, vector<8x128xf32> -> vector<8x128xf32>
    %c1_42 = arith.constant 1 : index
    %c0_43 = arith.constant 0 : index
    %c0_44 = arith.constant 0 : index
    %53 = vector.load %arg5[%c1_42, %c0_43, %c0_44] : memref<4x8x1xf32, #tpu.memory_space<vmem>>, vector<1x8x1xf32>
    %54 = vector.shape_cast %53 : vector<1x8x1xf32> to vector<8x1xf32>
    %55 = vector.broadcast %54 : vector<8x1xf32> to vector<8x128xf32>
    %56 = arith.addf %52, %55 : vector<8x128xf32>
    %57 = vector.extract_strided_slice %56 {offsets = [0, 0], sizes = [4, 128], strides = [1, 1]} : vector<8x128xf32> to vector<4x128xf32>
    %58 = vector.extract_strided_slice %56 {offsets = [4, 0], sizes = [4, 128], strides = [1, 1]} : vector<8x128xf32> to vector<4x128xf32>
    %59 = math.exp %57 : vector<4x128xf32>
    %60 = arith.mulf %59, %1 : vector<4x128xf32>
    %61 = arith.addf %60, %58 : vector<4x128xf32>
    %c1_45 = arith.constant 1 : index
    %c0_46 = arith.constant 0 : index
    %c0_47 = arith.constant 0 : index
    %c0_48 = arith.constant 0 : index
    %62 = vector.load %arg6[%c1_45, %c0_46, %c0_47, %c0_48] : memref<4x2x4x128xf32, #tpu.memory_space<vmem>>, vector<1x1x4x128xf32>
    %63 = vector.shape_cast %62 : vector<1x1x4x128xf32> to vector<4x128xf32>
    %64 = vector.shape_cast %61 : vector<4x128xf32> to vector<1x1x4x128xf32>
    tpu.vector_store %arg6[%c1_45, %c0_46, %c0_47, %c0_48], %64 {strides = array<i32>} : memref<4x2x4x128xf32, #tpu.memory_space<vmem>>, vector<1x1x4x128xf32>,
    %c1_49 = arith.constant 1 : index
    %c1_50 = arith.constant 1 : index
    %c0_51 = arith.constant 0 : index
    %c0_52 = arith.constant 0 : index
    %65 = vector.load %arg6[%c1_49, %c1_50, %c0_51, %c0_52] : memref<4x2x4x128xf32, #tpu.memory_space<vmem>>, vector<1x1x4x128xf32>
    %66 = vector.shape_cast %65 : vector<1x1x4x128xf32> to vector<4x128xf32>
    %67 = vector.shape_cast %28 : vector<4x128xf32> to vector<1x1x4x128xf32>
    tpu.vector_store %arg6[%c1_49, %c1_50, %c0_51, %c0_52], %67 {strides = array<i32>} : memref<4x2x4x128xf32, #tpu.memory_space<vmem>>, vector<1x1x4x128xf32>,
    %cst_53 = arith.constant dense<0.000000e+00> : vector<128xf32>
    %68 = vector.multi_reduction <add>, %57, %cst_53 [0] : vector<4x128xf32> to vector<128xf32>
    %69 = vector.shape_cast %68 : vector<128xf32> to vector<1x128xf32>
    %70 = arith.addf %37, %69 : vector<1x128xf32>
    %c2 = arith.constant 2 : index
    %c0_54 = arith.constant 0 : index
    %c0_55 = arith.constant 0 : index
    %71 = vector.load %arg2[%c2, %c0_54, %c0_55] : memref<4x64x4xf32, #tpu.memory_space<vmem>>, vector<1x64x4xf32>
    %72 = vector.shape_cast %71 : vector<1x64x4xf32> to vector<64x4xf32>
    %cst_56 = arith.constant dense<0.000000e+00> : vector<64x128xf32>
    %73 = tpu.matmul %72, %61, %cst_56 {dimension_numbers = #tpu.dot_dimension_numbers<[1], [0], [0], [1], [0, 0, 1, 1], [], []>} : vector<64x4xf32>, vector<4x128xf32>, vector<64x128xf32> -> vector<64x128xf32>
    %c2_57 = arith.constant 2 : index
    %c0_58 = arith.constant 0 : index
    %c0_59 = arith.constant 0 : index
    %74 = vector.load %arg3[%c2_57, %c0_58, %c0_59] : memref<4x64x1xf32, #tpu.memory_space<vmem>>, vector<1x64x1xf32>
    %75 = vector.shape_cast %74 : vector<1x64x1xf32> to vector<64x1xf32>
    %76 = vector.broadcast %75 : vector<64x1xf32> to vector<64x128xf32>
    %77 = arith.addf %73, %76 : vector<64x128xf32>
    %cst_60 = arith.constant 0.000000e+00 : f32
    %78 = vector.broadcast %cst_60 : f32 to vector<64x128xf32>
    %79 = arith.cmpf ogt, %77, %78 : vector<64x128xf32>
    %cst_61 = arith.constant 0.00999999977 : f32
    %80 = vector.broadcast %cst_61 : f32 to vector<64x128xf32>
    %81 = arith.mulf %80, %77 : vector<64x128xf32>
    %82 = arith.select %79, %77, %81 : vector<64x128xi1>, vector<64x128xf32>
    %c2_62 = arith.constant 2 : index
    %c0_63 = arith.constant 0 : index
    %c0_64 = arith.constant 0 : index
    %83 = vector.load %arg4[%c2_62, %c0_63, %c0_64] : memref<4x8x64xf32, #tpu.memory_space<vmem>>, vector<1x8x64xf32>
    %84 = vector.shape_cast %83 : vector<1x8x64xf32> to vector<8x64xf32>
    %cst_65 = arith.constant dense<0.000000e+00> : vector<8x128xf32>
    %85 = tpu.matmul %84, %82, %cst_65 {dimension_numbers = #tpu.dot_dimension_numbers<[1], [0], [0], [1], [0, 0, 1, 1], [], []>} : vector<8x64xf32>, vector<64x128xf32>, vector<8x128xf32> -> vector<8x128xf32>
    %c2_66 = arith.constant 2 : index
    %c0_67 = arith.constant 0 : index
    %c0_68 = arith.constant 0 : index
    %86 = vector.load %arg5[%c2_66, %c0_67, %c0_68] : memref<4x8x1xf32, #tpu.memory_space<vmem>>, vector<1x8x1xf32>
    %87 = vector.shape_cast %86 : vector<1x8x1xf32> to vector<8x1xf32>
    %88 = vector.broadcast %87 : vector<8x1xf32> to vector<8x128xf32>
    %89 = arith.addf %85, %88 : vector<8x128xf32>
    %90 = vector.extract_strided_slice %89 {offsets = [0, 0], sizes = [4, 128], strides = [1, 1]} : vector<8x128xf32> to vector<4x128xf32>
    %91 = vector.extract_strided_slice %89 {offsets = [4, 0], sizes = [4, 128], strides = [1, 1]} : vector<8x128xf32> to vector<4x128xf32>
    %92 = math.exp %90 : vector<4x128xf32>
    %93 = arith.mulf %92, %28 : vector<4x128xf32>
    %94 = arith.addf %93, %91 : vector<4x128xf32>
    %c2_69 = arith.constant 2 : index
    %c0_70 = arith.constant 0 : index
    %c0_71 = arith.constant 0 : index
    %c0_72 = arith.constant 0 : index
    %95 = vector.load %arg6[%c2_69, %c0_70, %c0_71, %c0_72] : memref<4x2x4x128xf32, #tpu.memory_space<vmem>>, vector<1x1x4x128xf32>
    %96 = vector.shape_cast %95 : vector<1x1x4x128xf32> to vector<4x128xf32>
    %97 = vector.shape_cast %61 : vector<4x128xf32> to vector<1x1x4x128xf32>
    tpu.vector_store %arg6[%c2_69, %c0_70, %c0_71, %c0_72], %97 {strides = array<i32>} : memref<4x2x4x128xf32, #tpu.memory_space<vmem>>, vector<1x1x4x128xf32>,
    %c2_73 = arith.constant 2 : index
    %c1_74 = arith.constant 1 : index
    %c0_75 = arith.constant 0 : index
    %c0_76 = arith.constant 0 : index
    %98 = vector.load %arg6[%c2_73, %c1_74, %c0_75, %c0_76] : memref<4x2x4x128xf32, #tpu.memory_space<vmem>>, vector<1x1x4x128xf32>
    %99 = vector.shape_cast %98 : vector<1x1x4x128xf32> to vector<4x128xf32>
    %100 = vector.shape_cast %94 : vector<4x128xf32> to vector<1x1x4x128xf32>
    tpu.vector_store %arg6[%c2_73, %c1_74, %c0_75, %c0_76], %100 {strides = array<i32>} : memref<4x2x4x128xf32, #tpu.memory_space<vmem>>, vector<1x1x4x128xf32>,
    %cst_77 = arith.constant dense<0.000000e+00> : vector<128xf32>
    %101 = vector.multi_reduction <add>, %90, %cst_77 [0] : vector<4x128xf32> to vector<128xf32>
    %102 = vector.shape_cast %101 : vector<128xf32> to vector<1x128xf32>
    %103 = arith.addf %70, %102 : vector<1x128xf32>
    %c3 = arith.constant 3 : index
    %c0_78 = arith.constant 0 : index
    %c0_79 = arith.constant 0 : index
    %104 = vector.load %arg2[%c3, %c0_78, %c0_79] : memref<4x64x4xf32, #tpu.memory_space<vmem>>, vector<1x64x4xf32>
    %105 = vector.shape_cast %104 : vector<1x64x4xf32> to vector<64x4xf32>
    %cst_80 = arith.constant dense<0.000000e+00> : vector<64x128xf32>
    %106 = tpu.matmul %105, %94, %cst_80 {dimension_numbers = #tpu.dot_dimension_numbers<[1], [0], [0], [1], [0, 0, 1, 1], [], []>} : vector<64x4xf32>, vector<4x128xf32>, vector<64x128xf32> -> vector<64x128xf32>
    %c3_81 = arith.constant 3 : index
    %c0_82 = arith.constant 0 : index
    %c0_83 = arith.constant 0 : index
    %107 = vector.load %arg3[%c3_81, %c0_82, %c0_83] : memref<4x64x1xf32, #tpu.memory_space<vmem>>, vector<1x64x1xf32>
    %108 = vector.shape_cast %107 : vector<1x64x1xf32> to vector<64x1xf32>
    %109 = vector.broadcast %108 : vector<64x1xf32> to vector<64x128xf32>
    %110 = arith.addf %106, %109 : vector<64x128xf32>
    %cst_84 = arith.constant 0.000000e+00 : f32
    %111 = vector.broadcast %cst_84 : f32 to vector<64x128xf32>
    %112 = arith.cmpf ogt, %110, %111 : vector<64x128xf32>
    %cst_85 = arith.constant 0.00999999977 : f32
    %113 = vector.broadcast %cst_85 : f32 to vector<64x128xf32>
    %114 = arith.mulf %113, %110 : vector<64x128xf32>
    %115 = arith.select %112, %110, %114 : vector<64x128xi1>, vector<64x128xf32>
    %c3_86 = arith.constant 3 : index
    %c0_87 = arith.constant 0 : index
    %c0_88 = arith.constant 0 : index
    %116 = vector.load %arg4[%c3_86, %c0_87, %c0_88] : memref<4x8x64xf32, #tpu.memory_space<vmem>>, vector<1x8x64xf32>
    %117 = vector.shape_cast %116 : vector<1x8x64xf32> to vector<8x64xf32>
    %cst_89 = arith.constant dense<0.000000e+00> : vector<8x128xf32>
    %118 = tpu.matmul %117, %115, %cst_89 {dimension_numbers = #tpu.dot_dimension_numbers<[1], [0], [0], [1], [0, 0, 1, 1], [], []>} : vector<8x64xf32>, vector<64x128xf32>, vector<8x128xf32> -> vector<8x128xf32>
    %c3_90 = arith.constant 3 : index
    %c0_91 = arith.constant 0 : index
    %c0_92 = arith.constant 0 : index
    %119 = vector.load %arg5[%c3_90, %c0_91, %c0_92] : memref<4x8x1xf32, #tpu.memory_space<vmem>>, vector<1x8x1xf32>
    %120 = vector.shape_cast %119 : vector<1x8x1xf32> to vector<8x1xf32>
    %121 = vector.broadcast %120 : vector<8x1xf32> to vector<8x128xf32>
    %122 = arith.addf %118, %121 : vector<8x128xf32>
    %123 = vector.extract_strided_slice %122 {offsets = [0, 0], sizes = [4, 128], strides = [1, 1]} : vector<8x128xf32> to vector<4x128xf32>
    %124 = vector.extract_strided_slice %122 {offsets = [4, 0], sizes = [4, 128], strides = [1, 1]} : vector<8x128xf32> to vector<4x128xf32>
    %125 = math.exp %123 : vector<4x128xf32>
    %126 = arith.mulf %125, %61 : vector<4x128xf32>
    %127 = arith.addf %126, %124 : vector<4x128xf32>
    %c3_93 = arith.constant 3 : index
    %c0_94 = arith.constant 0 : index
    %c0_95 = arith.constant 0 : index
    %c0_96 = arith.constant 0 : index
    %128 = vector.load %arg6[%c3_93, %c0_94, %c0_95, %c0_96] : memref<4x2x4x128xf32, #tpu.memory_space<vmem>>, vector<1x1x4x128xf32>
    %129 = vector.shape_cast %128 : vector<1x1x4x128xf32> to vector<4x128xf32>
    %130 = vector.shape_cast %127 : vector<4x128xf32> to vector<1x1x4x128xf32>
    tpu.vector_store %arg6[%c3_93, %c0_94, %c0_95, %c0_96], %130 {strides = array<i32>} : memref<4x2x4x128xf32, #tpu.memory_space<vmem>>, vector<1x1x4x128xf32>,
    %c3_97 = arith.constant 3 : index
    %c1_98 = arith.constant 1 : index
    %c0_99 = arith.constant 0 : index
    %c0_100 = arith.constant 0 : index
    %131 = vector.load %arg6[%c3_97, %c1_98, %c0_99, %c0_100] : memref<4x2x4x128xf32, #tpu.memory_space<vmem>>, vector<1x1x4x128xf32>
    %132 = vector.shape_cast %131 : vector<1x1x4x128xf32> to vector<4x128xf32>
    %133 = vector.shape_cast %94 : vector<4x128xf32> to vector<1x1x4x128xf32>
    tpu.vector_store %arg6[%c3_97, %c1_98, %c0_99, %c0_100], %133 {strides = array<i32>} : memref<4x2x4x128xf32, #tpu.memory_space<vmem>>, vector<1x1x4x128xf32>,
    %cst_101 = arith.constant dense<0.000000e+00> : vector<128xf32>
    %134 = vector.multi_reduction <add>, %123, %cst_101 [0] : vector<4x128xf32> to vector<128xf32>
    %135 = vector.shape_cast %134 : vector<128xf32> to vector<1x128xf32>
    %136 = arith.addf %103, %135 : vector<1x128xf32>
    %c0_102 = arith.constant 0 : index
    %c0_103 = arith.constant 0 : index
    %137 = vector.load %arg7[%c0_102, %c0_103] : memref<1x128xf32, #tpu.memory_space<vmem>>, vector<1x128xf32>
    tpu.vector_store %arg7[%c0_102, %c0_103], %136 {strides = array<i32>} : memref<1x128xf32, #tpu.memory_space<vmem>>, vector<1x128xf32>,
    %138 = arith.mulf %127, %127 : vector<4x128xf32>
    %cst_104 = arith.constant dense<0.000000e+00> : vector<128xf32>
    %139 = vector.multi_reduction <add>, %138, %cst_104 [0] : vector<4x128xf32> to vector<128xf32>
    %140 = vector.shape_cast %139 : vector<128xf32> to vector<1x128xf32>
    %141 = arith.mulf %94, %94 : vector<4x128xf32>
    %cst_105 = arith.constant dense<0.000000e+00> : vector<128xf32>
    %142 = vector.multi_reduction <add>, %141, %cst_105 [0] : vector<4x128xf32> to vector<128xf32>
    %143 = vector.shape_cast %142 : vector<128xf32> to vector<1x128xf32>
    %144 = arith.addf %140, %143 : vector<1x128xf32>
    %cst_106 = arith.constant -5.000000e-01 : f32
    %145 = vector.broadcast %cst_106 : f32 to vector<1x128xf32>
    %146 = arith.mulf %145, %144 : vector<1x128xf32>
    %cst_107 = arith.constant 7.35150814 : f32
    %147 = vector.broadcast %cst_107 : f32 to vector<1x128xf32>
    %148 = arith.subf %146, %147 : vector<1x128xf32>
    %c0_108 = arith.constant 0 : index
    %c0_109 = arith.constant 0 : index
    %149 = vector.load %arg8[%c0_108, %c0_109] : memref<1x128xf32, #tpu.memory_space<vmem>>, vector<1x128xf32>
    tpu.vector_store %arg8[%c0_108, %c0_109], %148 {strides = array<i32>} : memref<1x128xf32, #tpu.memory_space<vmem>>, vector<1x128xf32>,
    return
  }
  func.func @transform_0(%arg0: i32) -> (i32, i32, i32) {
    %c0_i32 = arith.constant 0 : i32
    %c0_i32_0 = arith.constant 0 : i32
    %c0_i32_1 = arith.constant 0 : i32
    return %c0_i32, %c0_i32_0, %arg0 : i32, i32, i32
  }
  func.func @transform_1(%arg0: i32) -> (i32, i32, i32) {
    %c0_i32 = arith.constant 0 : i32
    %c0_i32_0 = arith.constant 0 : i32
    %c0_i32_1 = arith.constant 0 : i32
    %c0_i32_2 = arith.constant 0 : i32
    return %c0_i32, %c0_i32_0, %c0_i32_1 : i32, i32, i32
  }
  func.func @transform_2(%arg0: i32) -> (i32, i32, i32) {
    %c0_i32 = arith.constant 0 : i32
    %c0_i32_0 = arith.constant 0 : i32
    %c0_i32_1 = arith.constant 0 : i32
    %c0_i32_2 = arith.constant 0 : i32
    return %c0_i32, %c0_i32_0, %c0_i32_1 : i32, i32, i32
  }
  func.func @transform_3(%arg0: i32) -> (i32, i32, i32) {
    %c0_i32 = arith.constant 0 : i32
    %c0_i32_0 = arith.constant 0 : i32
    %c0_i32_1 = arith.constant 0 : i32
    %c0_i32_2 = arith.constant 0 : i32
    return %c0_i32, %c0_i32_0, %c0_i32_1 : i32, i32, i32
  }
  func.func @transform_4(%arg0: i32) -> (i32, i32, i32) {
    %c0_i32 = arith.constant 0 : i32
    %c0_i32_0 = arith.constant 0 : i32
    %c0_i32_1 = arith.constant 0 : i32
    %c0_i32_2 = arith.constant 0 : i32
    return %c0_i32, %c0_i32_0, %c0_i32_1 : i32, i32, i32
  }
  func.func @transform_5(%arg0: i32) -> (i32, i32, i32, i32) {
    %c0_i32 = arith.constant 0 : i32
    %c0_i32_0 = arith.constant 0 : i32
    %c0_i32_1 = arith.constant 0 : i32
    %c0_i32_2 = arith.constant 0 : i32
    return %c0_i32, %c0_i32_0, %c0_i32_1, %arg0 : i32, i32, i32, i32
  }
  func.func @transform_6(%arg0: i32) -> (i32, i32) {
    %c0_i32 = arith.constant 0 : i32
    %c0_i32_0 = arith.constant 0 : i32
    return %c0_i32, %arg0 : i32, i32
  }
  func.func @transform_7(%arg0: i32) -> (i32, i32) {
    %c0_i32 = arith.constant 0 : i32
    %c0_i32_0 = arith.constant 0 : i32
    return %c0_i32, %arg0 : i32, i32
  }
}

</mosaic_0001>

<llo_original>
// kernel: squeeze.4
$region0: #{squeeze.4}
  %s0 = inlined_call_operand.vmem [shape: f32[1,256,2,4], index: 0, kind: input, shape index: {}]
  %s1 = inlined_call_operand.hbm [shape: f32[256,8], index: 1, kind: output, shape index: {}]
  $region1: #{squeeze.4} parent=0
    #allocation0 [shape = 'u8[8192]{0}', space=vmem, size = 0x2000, scoped, tag = 'operand span for operand 1']
    #allocation1 [shape = 's32[1]{0}', space=sflag, size = 0x4, scoped, tag = 'scoped memory for squeeze.4']
    #allocation2 [shape = 'u8[16384]{0}', space=vmem, size = 0x4000, scoped, tag = 'scoped mem for input reshape']
    %2 = vsyncpa [#allocation1], 0
    %s4 = sshllo.u32 0, 4
    %s5 = smul.addr 4, 3
    %s6 = scalar_lea.vmem %s0, %s5
    %v7 = vld [vmem:[%s6] sm:%s4]
    %s8 = scalar_lea.vmem [#allocation2], 24
    %9 = vst [vmem:[%s8] sm:%s4] %v7
    %s10 = smul.addr 4, 2
    %s11 = scalar_lea.vmem %s0, %s10
    %v12 = vld [vmem:[%s11] sm:%s4]
    %s13 = scalar_lea.vmem [#allocation2], 16
    %14 = vst [vmem:[%s13] sm:%s4] %v12
    %s15 = scalar_lea.vmem %s0, 4
    %v16 = vld [vmem:[%s15] sm:%s4]
    %s17 = scalar_lea.vmem [#allocation2], 8
    %18 = vst [vmem:[%s17] sm:%s4] %v16
    %v19 = vld [vmem:[%s0] sm:%s4]
    %20 = vst [vmem:[#allocation2] sm:%s4] %v19
    %v21 = vld [vmem:[#allocation2] sm:$0xf]
    %22 = vst [vmem:[#allocation0] sm:$0xf] %v21
    %s23 = scalar_lea.vmem [#allocation2], 8
    %v24 = vld [vmem:[%s23] sm:$0xf]
    %s25 = scalar_lea.vmem [#allocation0], 8
    %26 = vst [vmem:[%s25] sm:$0xf] %v24
    %s27 = scalar_lea.vmem [#allocation2], 16
    %v28 = vld [vmem:[%s27] sm:$0xf]
    %s29 = scalar_lea.vmem [#allocation0], 4
    %30 = vst [vmem:[%s29] sm:$0xf] %v28
    %s31 = scalar_lea.vmem [#allocation2], 24
    %v32 = vld [vmem:[%s31] sm:$0xf]
    %s33 = scalar_lea.vmem [#allocation0], 12
    %34 = vst [vmem:[%s33] sm:$0xf] %v32
    %s36 = ssub.s32 256, 256
    %37 = vsyncadd [#allocation1], %s36
    %s39 = sshll.u32 [#allocation0], 4
    %s40 = int_to_ptr.vmem [resolvable:$true] %s39
    %42 = dma.vmem_to_hbm [thread:$0]  %s40, 256, %s1, [#allocation1]
    %43 = dma.done [#allocation1], 256
    %44 = vsyncpa [#allocation1], 1

// kernel: normalizing_flow_model_forward.1
$region0: #{normalizing_flow_model_forward.1}
  #allocation0 [shape = 'u32[]', space=smem, size = 0x4, offset = 0x4, fixed_abs, tag = 'smem constant byte address 0x4 - core index']
  #allocation1 [shape = 'u32[144,128]{1,0:T(1,128)}', space=vmem, size = 0x12000, scoped, tag = 'internal scratch']
  %s0 = inlined_call_operand.vmem [shape: f32[2,4,256], index: 0, kind: input, shape index: {}]
  %s1 = inlined_call_operand.vmem [shape: f32[4,64,4], index: 1, kind: input, shape index: {}]
  %s2 = inlined_call_operand.vmem [shape: f32[4,64,1], index: 2, kind: input, shape index: {}]
  %s3 = inlined_call_operand.vmem [shape: f32[4,8,64], index: 3, kind: input, shape index: {}]
  %s4 = inlined_call_operand.vmem [shape: f32[4,8,1], index: 4, kind: input, shape index: {}]
  %s5 = inlined_call_operand.vmem [shape: f32[4,2,4,256], index: 5, kind: output, shape index: {0}]
  %s6 = inlined_call_operand.hbm [shape: f32[1,256], index: 6, kind: output, shape index: {1}]
  %s7 = inlined_call_operand.hbm [shape: f32[1,256], index: 7, kind: output, shape index: {2}]
  %8 = xla_tuple %s5, %s6, %s7
  %s9 = sld [smem:[#allocation0]]
  $region147: #{normalizing_flow_model_forward.1} parent=0
    _
  %s11 = ssub.s32 1, %s9
  %s12 = scalar_select 0, %s11, %s9
  $region1: #{normalizing_flow_model_forward.1} parent=0
    #allocation2 [shape = 'u8[8192]{0}', space=vmem, size = 0x2000, scoped, tag = 'input window, operand 0']
    #allocation3 [shape = 'u8[32768]{0}', space=vmem, size = 0x8000, scoped, tag = 'output window, operand 0']
    #allocation4 [shape = 'u8[1024]{0}', space=vmem, size = 0x400, scoped, tag = 'output window, operand 1']
    #allocation5 [shape = 's32[2]{0}', space=sflag, size = 0x8, scoped, tag = 'scoped memory for normalizing_flow_model_forward.1']
    #allocation6 [shape = 'u8[1024]{0}', space=vmem, size = 0x400, scoped, tag = 'output window, operand 2']
    #allocation7 [shape = 's32[2]{0}', space=sflag, size = 0x8, scoped, tag = 'scoped memory for normalizing_flow_model_forward.1']
    %13 = vsyncpa [#allocation5], 0
    %s14 = scalar_lea.sflag [#allocation5], 1
    %15 = vsyncpa %s14, 0
    %16 = vsyncpa [#allocation7], 0
    %s17 = scalar_lea.sflag [#allocation7], 1
    %18 = vsyncpa %s17, 0
    loop: start=0, step=1, limit=4
    $region2: #{normalizing_flow_model_forward.1} parent=1 // loop_pre_header
      _
    $region3: #{normalizing_flow_model_forward.1} parent=1 // loop_header
      %s20 = sphi 0, %s24
      %p21 = scmp.ge.s32.totalorder %s20, 4
      %s30 = sphi 0, %s32
      %s33 = sphi 0, %s30
      %s34 = sphi 0, %s33
      %s50 = sphi 0, %s34
      %s54 = sphi 0, %s54
      %s56 = sphi 0, %s54
      %s57 = sphi 0, %s56
      %s71 = sphi 0, %s57
      %s75 = sphi 0, %s75
      %s77 = sphi 0, %s75
      %s78 = sphi 0, %s77
      %s92 = sphi 0, %s78
      %s96 = sphi 0, %s96
      %s98 = sphi 0, %s96
      %s99 = sphi 0, %s98
      %s113 = sphi 0, %s99
      %s117 = sphi 0, %s117
      %s119 = sphi 0, %s117
      %s120 = sphi 0, %s119
      %s134 = sphi 0, %s120
      %s140 = sphi 0, %s142
      %s143 = sphi 0, %s140
      %s144 = sphi 0, %s143
      %s160 = sphi 0, %s144
      %s166 = sphi 0, %s168
      %s169 = sphi 0, %s166
      %s170 = sphi 0, %s169
      %s186 = sphi 0, %s170
      %s192 = sphi 0, %s194
      %s195 = sphi 0, %s192
      %s196 = sphi 0, %s195
      %s212 = sphi 0, %s196
    $region4: #{normalizing_flow_model_forward.1} parent=1 // loop_header_branch
      %23 = sbr.rel (%p21) target = $region8
    $region5: #{normalizing_flow_model_forward.1} parent=1 // loop_body
      %s25 = ssub.s32 %s20, 1
      %s26 = ssub.s32 %s20, 2
      %s27 = sadd.s32 %s20, 1
      %s28 = ssub.s32 %s20, %s27
      %p29 = scmp.eq.s32.totalorder %s28, 0
      %s31 = sadd.s32 %s30, 1
      %s32 = scalar_select %p29, %s30, %s31
      %p35 = pneg %p29
      %p36 = scmp.eq.s32.totalorder %s20, 1
      %p37 = por %p35, %p36
      %p38 = scmp.ne.s32.totalorder %s30, %s33
      %p39 = scmp.eq.s32.totalorder %s20, 0
      %p40 = por %p38, %p39
      %p41 = scmp.ne.s32.totalorder %s30, %s33
      %p42 = scmp.eq.s32.totalorder %s25, 1
      %p43 = por %p41, %p42
      %p44 = scmp.ne.s32.totalorder %s33, %s34
      %p45 = scmp.eq.s32.totalorder %s25, 0
      %p46 = por %p44, %p45
      %p47 = scmp.ne.s32.totalorder %s33, %s34
      %p48 = scmp.eq.s32.totalorder %s26, 1
      %p49 = por %p47, %p48
      %p51 = scmp.ne.s32.totalorder %s34, %s50
      %p52 = scmp.eq.s32.totalorder %s26, 0
      %p53 = por %p51, %p52
      %s55 = sadd.s32 %s54, 1
      %p58 = scmp.eq.s32.totalorder %s20, 1
      %p59 = scmp.ne.s32.totalorder %s54, %s56
      %p60 = scmp.eq.s32.totalorder %s20, 0
      %p61 = por %p59, %p60
      %p62 = scmp.ne.s32.totalorder %s54, %s56
      %p63 = scmp.eq.s32.totalorder %s25, 1
      %p64 = por %p62, %p63
      %p65 = scmp.ne.s32.totalorder %s56, %s57
      %p66 = scmp.eq.s32.totalorder %s25, 0
      %p67 = por %p65, %p66
      %p68 = scmp.ne.s32.totalorder %s56, %s57
      %p69 = scmp.eq.s32.totalorder %s26, 1
      %p70 = por %p68, %p69
      %p72 = scmp.ne.s32.totalorder %s57, %s71
      %p73 = scmp.eq.s32.totalorder %s26, 0
      %p74 = por %p72, %p73
      %s76 = sadd.s32 %s75, 1
      %p79 = scmp.eq.s32.totalorder %s20, 1
      %p80 = scmp.ne.s32.totalorder %s75, %s77
      %p81 = scmp.eq.s32.totalorder %s20, 0
      %p82 = por %p80, %p81
      %p83 = scmp.ne.s32.totalorder %s75, %s77
      %p84 = scmp.eq.s32.totalorder %s25, 1
      %p85 = por %p83, %p84
      %p86 = scmp.ne.s32.totalorder %s77, %s78
      %p87 = scmp.eq.s32.totalorder %s25, 0
      %p88 = por %p86, %p87
      %p89 = scmp.ne.s32.totalorder %s77, %s78
      %p90 = scmp.eq.s32.totalorder %s26, 1
      %p91 = por %p89, %p90
      %p93 = scmp.ne.s32.totalorder %s78, %s92
      %p94 = scmp.eq.s32.totalorder %s26, 0
      %p95 = por %p93, %p94
      %s97 = sadd.s32 %s96, 1
      %p100 = scmp.eq.s32.totalorder %s20, 1
      %p101 = scmp.ne.s32.totalorder %s96, %s98
      %p102 = scmp.eq.s32.totalorder %s20, 0
      %p103 = por %p101, %p102
      %p104 = scmp.ne.s32.totalorder %s96, %s98
      %p105 = scmp.eq.s32.totalorder %s25, 1
      %p106 = por %p104, %p105
      %p107 = scmp.ne.s32.totalorder %s98, %s99
      %p108 = scmp.eq.s32.totalorder %s25, 0
      %p109 = por %p107, %p108
      %p110 = scmp.ne.s32.totalorder %s98, %s99
      %p111 = scmp.eq.s32.totalorder %s26, 1
      %p112 = por %p110, %p111
      %p114 = scmp.ne.s32.totalorder %s99, %s113
      %p115 = scmp.eq.s32.totalorder %s26, 0
      %p116 = por %p114, %p115
      %s118 = sadd.s32 %s117, 1
      %p121 = scmp.eq.s32.totalorder %s20, 1
      %p122 = scmp.ne.s32.totalorder %s117, %s119
      %p123 = scmp.eq.s32.totalorder %s20, 0
      %p124 = por %p122, %p123
      %p125 = scmp.ne.s32.totalorder %s117, %s119
      %p126 = scmp.eq.s32.totalorder %s25, 1
      %p127 = por %p125, %p126
      %p128 = scmp.ne.s32.totalorder %s119, %s120
      %p129 = scmp.eq.s32.totalorder %s25, 0
      %p130 = por %p128, %p129
      %p131 = scmp.ne.s32.totalorder %s119, %s120
      %p132 = scmp.eq.s32.totalorder %s26, 1
      %p133 = por %p131, %p132
      %p135 = scmp.ne.s32.totalorder %s120, %s134
      %p136 = scmp.eq.s32.totalorder %s26, 0
      %p137 = por %p135, %p136
      %s138 = ssub.s32 %s20, %s27
      %p139 = scmp.eq.s32.totalorder %s138, 0
      %s141 = sadd.s32 %s140, 1
      %s142 = scalar_select %p139, %s140, %s141
      %p145 = pneg %p139
      %p146 = scmp.eq.s32.totalorder %s20, 1
      %p147 = por %p145, %p146
      %p148 = scmp.ne.s32.totalorder %s140, %s143
      %p149 = scmp.eq.s32.totalorder %s20, 0
      %p150 = por %p148, %p149
      %p151 = scmp.ne.s32.totalorder %s140, %s143
      %p152 = scmp.eq.s32.totalorder %s25, 1
      %p153 = por %p151, %p152
      %p154 = scmp.ne.s32.totalorder %s143, %s144
      %p155 = scmp.eq.s32.totalorder %s25, 0
      %p156 = por %p154, %p155
      %p157 = scmp.ne.s32.totalorder %s143, %s144
      %p158 = scmp.eq.s32.totalorder %s26, 1
      %p159 = por %p157, %p158
      %p161 = scmp.ne.s32.totalorder %s144, %s160
      %p162 = scmp.eq.s32.totalorder %s26, 0
      %p163 = por %p161, %p162
      %s164 = ssub.s32 %s20, %s27
      %p165 = scmp.eq.s32.totalorder %s164, 0
      %s167 = sadd.s32 %s166, 1
      %s168 = scalar_select %p165, %s166, %s167
      %p171 = pneg %p165
      %p172 = scmp.eq.s32.totalorder %s20, 1
      %p173 = por %p171, %p172
      %p174 = scmp.ne.s32.totalorder %s166, %s169
      %p175 = scmp.eq.s32.totalorder %s20, 0
      %p176 = por %p174, %p175
      %p177 = scmp.ne.s32.totalorder %s166, %s169
      %p178 = scmp.eq.s32.totalorder %s25, 1
      %p179 = por %p177, %p178
      %p180 = scmp.ne.s32.totalorder %s169, %s170
      %p181 = scmp.eq.s32.totalorder %s25, 0
      %p182 = por %p180, %p181
      %p183 = scmp.ne.s32.totalorder %s169, %s170
      %p184 = scmp.eq.s32.totalorder %s26, 1
      %p185 = por %p183, %p184
      %p187 = scmp.ne.s32.totalorder %s170, %s186
      %p188 = scmp.eq.s32.totalorder %s26, 0
      %p189 = por %p187, %p188
      %s190 = ssub.s32 %s20, %s27
      %p191 = scmp.eq.s32.totalorder %s190, 0
      %s193 = sadd.s32 %s192, 1
      %s194 = scalar_select %p191, %s192, %s193
      %p197 = pneg %p191
      %p198 = scmp.eq.s32.totalorder %s20, 1
      %p199 = por %p197, %p198
      %p200 = scmp.ne.s32.totalorder %s192, %s195
      %p201 = scmp.eq.s32.totalorder %s20, 0
      %p202 = por %p200, %p201
      %p203 = scmp.ne.s32.totalorder %s192, %s195
      %p204 = scmp.eq.s32.totalorder %s25, 1
      %p205 = por %p203, %p204
      %p206 = scmp.ne.s32.totalorder %s195, %s196
      %p207 = scmp.eq.s32.totalorder %s25, 0
      %p208 = por %p206, %p207
      %p209 = scmp.ne.s32.totalorder %s195, %s196
      %p210 = scmp.eq.s32.totalorder %s26, 1
      %p211 = por %p209, %p210
      %p213 = scmp.ne.s32.totalorder %s196, %s212
      %p214 = scmp.eq.s32.totalorder %s26, 0
      %p215 = por %p213, %p214
      %p216 = scmp.le.s32.totalorder 1, %s20
      %p217 = scmp.lt.s32.totalorder %s20, 3
      %p218 = pnand %p216, %p217
      %p219 = pneg %p218
      // Predicated region
      $region9: #{normalizing_flow_model_forward.1} parent=5 // pred_check
        _
      $region10: #{normalizing_flow_model_forward.1} parent=5 // pred_check_branch
        %221 = sbr.rel (%p218) target = $region12
      $region11: #{normalizing_flow_model_forward.1} parent=5 // pred_region
        %s222 = ssub.s32 %s20, 1
        // Predicated region
        $region13: #{normalizing_flow_model_forward.1} parent=11 // pred_check
          %p223 = pneg %p67
        $region14: #{normalizing_flow_model_forward.1} parent=11 // pred_check_branch
          %225 = sbr.rel (%p223) target = $region16
        $region15: #{normalizing_flow_model_forward.1} parent=11 // pred_region
          _
        $region16: #{normalizing_flow_model_forward.1} parent=11 // pred_fallthru
          _
        // Predicated region
        $region17: #{normalizing_flow_model_forward.1} parent=11 // pred_check
          %p226 = pneg %p88
        $region18: #{normalizing_flow_model_forward.1} parent=11 // pred_check_branch
          %228 = sbr.rel (%p226) target = $region20
        $region19: #{normalizing_flow_model_forward.1} parent=11 // pred_region
          _
        $region20: #{normalizing_flow_model_forward.1} parent=11 // pred_fallthru
          _
        // Predicated region
        $region21: #{normalizing_flow_model_forward.1} parent=11 // pred_check
          %p229 = pneg %p109
        $region22: #{normalizing_flow_model_forward.1} parent=11 // pred_check_branch
          %231 = sbr.rel (%p229) target = $region24
        $region23: #{normalizing_flow_model_forward.1} parent=11 // pred_region
          _
        $region24: #{normalizing_flow_model_forward.1} parent=11 // pred_fallthru
          _
        // Predicated region
        $region25: #{normalizing_flow_model_forward.1} parent=11 // pred_check
          %p232 = pneg %p130
        $region26: #{normalizing_flow_model_forward.1} parent=11 // pred_check_branch
          %234 = sbr.rel (%p232) target = $region28
        $region27: #{normalizing_flow_model_forward.1} parent=11 // pred_region
          _
        $region28: #{normalizing_flow_model_forward.1} parent=11 // pred_fallthru
          _
      $region12: #{normalizing_flow_model_forward.1} parent=5 // pred_fallthru
        _
      %p235 = scmp.lt.s32.totalorder %s20, 2
      // Predicated region
      $region29: #{normalizing_flow_model_forward.1} parent=5 // pred_check
        %p236 = pneg %p235
      $region30: #{normalizing_flow_model_forward.1} parent=5 // pred_check_branch
        %238 = sbr.rel (%p236) target = $region32
      $region31: #{normalizing_flow_model_forward.1} parent=5 // pred_region
        // Predicated region
        $region33: #{normalizing_flow_model_forward.1} parent=31 // pred_check
          %p239 = pneg %p40
        $region34: #{normalizing_flow_model_forward.1} parent=31 // pred_check_branch
          %241 = sbr.rel (%p239) target = $region36
        $region35: #{normalizing_flow_model_forward.1} parent=31 // pred_region
          %s242 = sand.u32 %s30, 1
          %s243 = sand.u32 %s30, 1
          %s244 = smul.addr %s243, 8
          %s245 = scalar_lea.vmem [#allocation2], %s244
          %s246 = smul.addr %s20, 4
          %s247 = scalar_lea.vmem %s0, %s246
          // Predicated region
          $region37: #{normalizing_flow_model_forward.1} parent=35 // pred_check
            _
          $region38: #{normalizing_flow_model_forward.1} parent=35 // pred_check_branch
            %249 = sbr.rel (0) target = $region40
          $region39: #{normalizing_flow_model_forward.1} parent=35 // pred_region
            // Predicated region
            $region41: #{normalizing_flow_model_forward.1} parent=39 // pred_check
              _
            $region42: #{normalizing_flow_model_forward.1} parent=39 // pred_check_branch
              %251 = sbr.rel target = $region44
            $region43: #{normalizing_flow_model_forward.1} parent=39 // pred_region
              // Predicated region
              $region56: #{normalizing_flow_model_forward.1} parent=43 // pred_check
                _
              $region57: #{normalizing_flow_model_forward.1} parent=43 // pred_check_branch
                %268 = sbr.rel (0) target = $region59
              $region58: #{normalizing_flow_model_forward.1} parent=43 // pred_region
                loop: start=0, step=1, limit=1
                $region60: #{normalizing_flow_model_forward.1} parent=58 // loop_pre_header
                  _
                $region61: #{normalizing_flow_model_forward.1} parent=58 // loop_header
                  %s270 = sphi 0, %s274
                  %p271 = scmp.ge.s32.totalorder %s270, 1
                  %s275 = sphi %s247, %s247
                  %s276 = sphi %s245, %s245
                $region62: #{normalizing_flow_model_forward.1} parent=58 // loop_header_branch
                  %273 = sbr.rel (%p271) target = $region66
                $region63: #{normalizing_flow_model_forward.1} parent=58 // loop_body
                  _
                $region64: #{normalizing_flow_model_forward.1} parent=58 // loop_footer
                  %s274 = sadd.s32 1, %s270
                $region65: #{normalizing_flow_model_forward.1} parent=58 // loop_footer_branch
                  %269 = sbr.rel target = $region61
                $region66: #{normalizing_flow_model_forward.1} parent=58 // loop_exit
                  _
                loop: start=0, step=1, limit=1
                $region67: #{normalizing_flow_model_forward.1} parent=58 // loop_pre_header
                  _
                $region68: #{normalizing_flow_model_forward.1} parent=58 // loop_header
                  %s279 = sphi 0, %s283
                  %p280 = scmp.ge.s32.totalorder %s279, 1
                  %s284 = sphi %s247, %s247
                  %s285 = sphi %s245, %s245
                $region69: #{normalizing_flow_model_forward.1} parent=58 // loop_header_branch
                  %282 = sbr.rel (%p280) target = $region73
                $region70: #{normalizing_flow_model_forward.1} parent=58 // loop_body
                  %v286 = vld [vmem:[%s284] sm:$0xf]
                  %287 = vst [vmem:[%s285] sm:$0xf] %v286
                  %v288 = vld [vmem:[%s284 + $0x8] sm:$0xf]
                  %289 = vst [vmem:[%s285 + $0x4] sm:$0xf] %v288
                $region71: #{normalizing_flow_model_forward.1} parent=58 // loop_footer
                  %s283 = sadd.s32 1, %s279
                $region72: #{normalizing_flow_model_forward.1} parent=58 // loop_footer_branch
                  %278 = sbr.rel target = $region68
                $region73: #{normalizing_flow_model_forward.1} parent=58 // loop_exit
                  _
              $region59: #{normalizing_flow_model_forward.1} parent=43 // pred_fallthru
                _
            $region44: #{normalizing_flow_model_forward.1} parent=39 // pred_fallthru
              _
            // Predicated region
            $region45: #{normalizing_flow_model_forward.1} parent=39 // pred_check
              _
            $region46: #{normalizing_flow_model_forward.1} parent=39 // pred_check_branch
              %253 = sbr.rel (0) target = $region48
            $region47: #{normalizing_flow_model_forward.1} parent=39 // pred_region
              loop: start=0, step=1, limit=1
              $region49: #{normalizing_flow_model_forward.1} parent=47 // loop_pre_header
                _
              $region50: #{normalizing_flow_model_forward.1} parent=47 // loop_header
                %s256 = sphi 0, %s260
                %p257 = scmp.ge.s32.totalorder %s256, 1
                %s261 = sphi %s247, %s247
                %s262 = sphi %s245, %s245
              $region51: #{normalizing_flow_model_forward.1} parent=47 // loop_header_branch
                %259 = sbr.rel (%p257) target = $region55
              $region52: #{normalizing_flow_model_forward.1} parent=47 // loop_body
                %v263 = vld [vmem:[%s261] sm:$0xf]
                %264 = vst [vmem:[%s262] sm:$0xf] %v263
                %v265 = vld [vmem:[%s261 + $0x8] sm:$0xf]
                %266 = vst [vmem:[%s262 + $0x4] sm:$0xf] %v265
              $region53: #{normalizing_flow_model_forward.1} parent=47 // loop_footer
                %s260 = sadd.s32 1, %s256
              $region54: #{normalizing_flow_model_forward.1} parent=47 // loop_footer_branch
                %255 = sbr.rel target = $region50
              $region55: #{normalizing_flow_model_forward.1} parent=47 // loop_exit
                _
            $region48: #{normalizing_flow_model_forward.1} parent=39 // pred_fallthru
              _
          $region40: #{normalizing_flow_model_forward.1} parent=35 // pred_fallthru
            _
          %290 = vnop
        $region36: #{normalizing_flow_model_forward.1} parent=31 // pred_fallthru
          _
      $region32: #{normalizing_flow_model_forward.1} parent=5 // pred_fallthru
        _
      %p291 = scmp.le.s32.totalorder 1, %s20
      %p292 = scmp.lt.s32.totalorder %s20, 3
      %p293 = pnand %p291, %p292
      %p294 = pneg %p293
      // Predicated region
      $region74: #{normalizing_flow_model_forward.1} parent=5 // pred_check
        _
      $region75: #{normalizing_flow_model_forward.1} parent=5 // pred_check_branch
        %296 = sbr.rel (%p293) target = $region77
      $region76: #{normalizing_flow_model_forward.1} parent=5 // pred_region
        %s297 = ssub.s32 %s20, 1
        %s298 = sand.u32 %s33, 1
        %s299 = sand.u32 %s33, 1
        %s300 = smul.addr %s299, 8
        %s301 = scalar_lea.vmem [#allocation2], %s300
        // Predicated region
        $region78: #{normalizing_flow_model_forward.1} parent=76 // pred_check
          %p302 = pneg %p46
        $region79: #{normalizing_flow_model_forward.1} parent=76 // pred_check_branch
          %304 = sbr.rel (%p302) target = $region81
        $region80: #{normalizing_flow_model_forward.1} parent=76 // pred_region
          _
        $region81: #{normalizing_flow_model_forward.1} parent=76 // pred_fallthru
          _
        %s305 = sand.u32 %s33, 1
        %s306 = sand.u32 %s33, 1
        %s307 = smul.addr %s306, 8
        %s308 = scalar_lea.vmem [#allocation2], %s307
        %p309 = pneg %p46
        %p310 = pneg %p43
        %p311 = pneg %p67
        %p312 = pneg %p64
        %p313 = pneg %p88
        %p314 = pneg %p85
        %p315 = pneg %p109
        %p316 = pneg %p106
        %p317 = pneg %p130
        %p318 = pneg %p127
        %p319 = pneg %p156
        %p320 = pneg %p153
        %s321 = sand.u32 %s143, 1
        %s322 = sand.u32 %s143, 1
        %s323 = smul.addr %s322, 32
        %s324 = scalar_lea.vmem [#allocation3], %s323
        %p325 = pneg %p182
        %p326 = pneg %p179
        %s327 = sand.u32 %s169, 1
        %s328 = scalar_lea.sflag [#allocation5], %s327
        %s329 = sand.u32 %s169, 1
        %s330 = scalar_lea.vmem [#allocation4], %s329
        %p331 = pneg %p208
        %p332 = pneg %p205
        %s333 = sand.u32 %s195, 1
        %s334 = scalar_lea.sflag [#allocation7], %s333
        %s335 = sand.u32 %s195, 1
        %s336 = scalar_lea.vmem [#allocation6], %s335
        %v337 = vld [vmem:[%s301] sm:$0xf]
        %s338 = scalar_lea.vmem %s301, 4 [#allocation2]
        %v339 = vld [vmem:[%s338] sm:$0xf]
        %v340 = vld [vmem:[%s1] sm:$0xff]
        %v341 = vld [vmem:[%s1 + $0x8] sm:$0xff]
        %v342 = vld [vmem:[%s1 + $0x10] sm:$0xff]
        %v343 = vld [vmem:[%s1 + $0x18] sm:$0xff]
        %v344 = vld [vmem:[%s1 + $0x20] sm:$0xff]
        %v345 = vld [vmem:[%s1 + $0x28] sm:$0xff]
        %v346 = vld [vmem:[%s1 + $0x30] sm:$0xff]
        %v347 = vld [vmem:[%s1 + $0x38] sm:$0xff]
        %v348 = vld [vmem:[%s2] sm:$0xff]
        %v349 = vld [vmem:[%s2 + $0x8] sm:$0xff]
        %v350 = vld [vmem:[%s2 + $0x10] sm:$0xff]
        %v351 = vld [vmem:[%s2 + $0x18] sm:$0xff]
        %v352 = vld [vmem:[%s2 + $0x20] sm:$0xff]
        %v353 = vld [vmem:[%s2 + $0x28] sm:$0xff]
        %v354 = vld [vmem:[%s2 + $0x30] sm:$0xff]
        %v355 = vld [vmem:[%s2 + $0x38] sm:$0xff]
        %357 = vset.pattern.permute.xlu0 0
        %358 = vperm.xlu0 %357, %v348
        %v359 = vpop.permute.xlu0 %358
        %362 = vset.pattern.permute.xlu0 0
        %363 = vperm.xlu0 %362, %v349
        %v364 = vpop.permute.xlu0 %363
        %367 = vset.pattern.permute.xlu0 0
        %368 = vperm.xlu0 %367, %v350
        %v369 = vpop.permute.xlu0 %368
        %372 = vset.pattern.permute.xlu0 0
        %373 = vperm.xlu0 %372, %v351
        %v374 = vpop.permute.xlu0 %373
        %377 = vset.pattern.permute.xlu0 0
        %378 = vperm.xlu0 %377, %v352
        %v379 = vpop.permute.xlu0 %378
        %382 = vset.pattern.permute.xlu0 0
        %383 = vperm.xlu0 %382, %v353
        %v384 = vpop.permute.xlu0 %383
        %387 = vset.pattern.permute.xlu0 0
        %388 = vperm.xlu0 %387, %v354
        %v389 = vpop.permute.xlu0 %388
        %392 = vset.pattern.permute.xlu0 0
        %393 = vperm.xlu0 %392, %v355
        %v394 = vpop.permute.xlu0 %393
        %vm396 = vcmask 31744
        %v398 = vsel %vm396, %v340, 0
        %v401 = vsel %vm396, %v341, 0
        %v404 = vsel %vm396, %v342, 0
        %v407 = vsel %vm396, %v343, 0
        %v410 = vsel %vm396, %v344, 0
        %v413 = vsel %vm396, %v345, 0
        %v416 = vsel %vm396, %v346, 0
        %v419 = vsel %vm396, %v347, 0
        %vm421 = vcmask 1043456
        %v423 = vsel %vm421, %v337, 0
        %425 = vmatprep.subr.mxu0 0.0
        %426 = vmatpush1.msra.mxu0 %v423
        %427 = vmatprep.subr.mxu0 0.0
        %428 = vmatpush1.msra.mxu0 0.0
        %429 = vmatprep.subr.mxu0 0.0
        %430 = vmatpush1.msra.mxu0 0.0
        %431 = vmatprep.subr.mxu0 0.0
        %432 = vmatpush1.msra.mxu0 0.0
        %433 = vmatprep.subr.mxu0 0.0
        %434 = vmatpush1.msra.mxu0 0.0
        %435 = vmatprep.subr.mxu0 0.0
        %436 = vmatpush1.msra.mxu0 0.0
        %437 = vmatprep.subr.mxu0 0.0
        %438 = vmatpush1.msra.mxu0 0.0
        %439 = vmatprep.subr.mxu0 0.0
        %440 = vmatpush1.msra.mxu0 0.0
        %441 = vmatprep.subr.mxu0 0.0
        %442 = vmatpush1.msra.mxu0 0.0
        %443 = vmatprep.subr.mxu0 0.0
        %444 = vmatpush1.msra.mxu0 0.0
        %445 = vmatprep.subr.mxu0 0.0
        %446 = vmatpush1.msra.mxu0 0.0
        %447 = vmatprep.subr.mxu0 0.0
        %448 = vmatpush1.msra.mxu0 0.0
        %449 = vmatprep.subr.mxu0 0.0
        %450 = vmatpush1.msra.mxu0 0.0
        %451 = vmatprep.subr.mxu0 0.0
        %452 = vmatpush1.msra.mxu0 0.0
        %453 = vmatprep.subr.mxu0 0.0
        %454 = vmatpush1.msra.mxu0 0.0
        %455 = vmatprep.subr.mxu0 0.0
        %456 = vmatpush1.msra.mxu0 0.0
        %457 = vmatprep.subr.mxu0 0.0
        %458 = vmatpush1.msra.mxu0 0.0
        %459 = vmatprep.subr.mxu0 0.0
        %460 = vmatpush1.msra.mxu0 0.0
        %461 = vmatprep.subr.mxu0 0.0
        %462 = vmatpush1.msra.mxu0 0.0
        %463 = vmatprep.subr.mxu0 0.0
        %464 = vmatpush1.msra.mxu0 0.0
        %465 = vmatprep.subr.mxu0 0.0
        %466 = vmatpush1.msra.mxu0 0.0
        %467 = vmatprep.subr.mxu0 0.0
        %468 = vmatpush1.msra.mxu0 0.0
        %469 = vmatprep.subr.mxu0 0.0
        %470 = vmatpush1.msra.mxu0 0.0
        %471 = vmatprep.subr.mxu0 0.0
        %472 = vmatpush1.msra.mxu0 0.0
        %473 = vmatprep.subr.mxu0 0.0
        %474 = vmatpush1.msra.mxu0 0.0
        %475 = vmatprep.subr.mxu0 0.0
        %476 = vmatpush1.msra.mxu0 0.0
        %477 = vmatprep.subr.mxu0 0.0
        %478 = vmatpush1.msra.mxu0 0.0
        %479 = vmatprep.subr.mxu0 0.0
        %480 = vmatpush1.msra.mxu0 0.0
        %481 = vmatprep.subr.mxu0 0.0
        %482 = vmatpush1.msra.mxu0 0.0
        %483 = vmatprep.subr.mxu0 0.0
        %484 = vmatpush1.msra.mxu0 0.0
        %485 = vmatprep.subr.mxu0 0.0
        %486 = vmatpush1.msra.mxu0 0.0
        %487 = vmatprep.subr.mxu0 0.0
        %488 = vmatpush1.msra.mxu0 0.0
        %489 = vmatprep.mubr.f32.mxu0 0.0
        %490 = vmatmul.mubr.f32.gmra.mrb[0].mxu0 %v398
        %v491 = vpop.f32.mrb[0].mxu0
        %v492 = vadd.f32 %v359, %v491
        %v493 = vpop.f32.mrb[0].mxu0
        %494 = vmatprep.mubr.f32.mxu0 0.0
        %495 = vmatmul.mubr.f32.gmra.mrb[0].mxu0 %v401
        %v496 = vpop.f32.mrb[0].mxu0
        %v497 = vadd.f32 %v364, %v496
        %v498 = vpop.f32.mrb[0].mxu0
        %499 = vmatprep.mubr.f32.mxu0 0.0
        %500 = vmatmul.mubr.f32.gmra.mrb[0].mxu0 %v404
        %v501 = vpop.f32.mrb[0].mxu0
        %v502 = vadd.f32 %v369, %v501
        %v503 = vpop.f32.mrb[0].mxu0
        %504 = vmatprep.mubr.f32.mxu0 0.0
        %505 = vmatmul.mubr.f32.gmra.mrb[0].mxu0 %v407
        %v506 = vpop.f32.mrb[0].mxu0
        %v507 = vadd.f32 %v374, %v506
        %v508 = vpop.f32.mrb[0].mxu0
        %509 = vmatprep.mubr.f32.mxu0 0.0
        %510 = vmatmul.mubr.f32.gmra.mrb[0].mxu0 %v410
        %v511 = vpop.f32.mrb[0].mxu0
        %v512 = vadd.f32 %v379, %v511
        %v513 = vpop.f32.mrb[0].mxu0
        %514 = vmatprep.mubr.f32.mxu0 0.0
        %515 = vmatmul.mubr.f32.gmra.mrb[0].mxu0 %v413
        %v516 = vpop.f32.mrb[0].mxu0
        %v517 = vadd.f32 %v384, %v516
        %v518 = vpop.f32.mrb[0].mxu0
        %519 = vmatprep.mubr.f32.mxu0 0.0
        %520 = vmatmul.mubr.f32.gmra.mrb[0].mxu0 %v416
        %v521 = vpop.f32.mrb[0].mxu0
        %v522 = vadd.f32 %v389, %v521
        %v523 = vpop.f32.mrb[0].mxu0
        %524 = vmatprep.mubr.f32.mxu0 0.0
        %525 = vmatmul.mubr.f32.gmra.mrb[0].mxu0 %v419
        %v526 = vpop.f32.mrb[0].mxu0
        %v527 = vadd.f32 %v394, %v526
        %v528 = vpop.f32.mrb[0].mxu0
        %529 = vdwg.mxu0
        %vm530 = vcmp.gt.f32.partialorder %v492, 0.0
        %vm531 = vcmp.gt.f32.partialorder %v497, 0.0
        %vm532 = vcmp.gt.f32.partialorder %v502, 0.0
        %vm533 = vcmp.gt.f32.partialorder %v507, 0.0
        %vm534 = vcmp.gt.f32.partialorder %v512, 0.0
        %vm535 = vcmp.gt.f32.partialorder %v517, 0.0
        %vm536 = vcmp.gt.f32.partialorder %v522, 0.0
        %vm537 = vcmp.gt.f32.partialorder %v527, 0.0
        %v538 = vmul.f32 %v492, 0.01
        %v539 = vmul.f32 %v497, 0.01
        %v540 = vmul.f32 %v502, 0.01
        %v541 = vmul.f32 %v507, 0.01
        %v542 = vmul.f32 %v512, 0.01
        %v543 = vmul.f32 %v517, 0.01
        %v544 = vmul.f32 %v522, 0.01
        %v545 = vmul.f32 %v527, 0.01
        %v546 = vsel %vm530, %v492, %v538
        %v547 = vsel %vm531, %v497, %v539
        %v548 = vsel %vm532, %v502, %v540
        %v549 = vsel %vm533, %v507, %v541
        %v550 = vsel %vm534, %v512, %v542
        %v551 = vsel %vm535, %v517, %v543
        %v552 = vsel %vm536, %v522, %v544
        %v553 = vsel %vm537, %v527, %v545
        %v554 = vld [vmem:[%s3] sm:$0xff]
        %v555 = vld [vmem:[%s4] sm:$0xff]
        %557 = vset.pattern.permute.xlu0 0
        %558 = vperm.xlu0 %557, %v555
        %v559 = vpop.permute.xlu0 %558
        %vm561 = vcmask 523264
        %v563 = vsel %vm561, %v554, 0
        %565 = vmatprep.subr.mxu0 0.0
        %566 = vmatpush1.msra.mxu0 %v546
        %567 = vmatprep.subr.mxu0 0.0
        %568 = vmatpush1.msra.mxu0 %v547
        %569 = vmatprep.subr.mxu0 0.0
        %570 = vmatpush1.msra.mxu0 %v548
        %571 = vmatprep.subr.mxu0 0.0
        %572 = vmatpush1.msra.mxu0 %v549
        %573 = vmatprep.subr.mxu0 0.0
        %574 = vmatpush1.msra.mxu0 %v550
        %575 = vmatprep.subr.mxu0 0.0
        %576 = vmatpush1.msra.mxu0 %v551
        %577 = vmatprep.subr.mxu0 0.0
        %578 = vmatpush1.msra.mxu0 %v552
        %579 = vmatprep.subr.mxu0 0.0
        %580 = vmatpush1.msra.mxu0 %v553
        %581 = vmatprep.subr.mxu0 0.0
        %582 = vmatpush1.msra.mxu0 0.0
        %583 = vmatprep.subr.mxu0 0.0
        %584 = vmatpush1.msra.mxu0 0.0
        %585 = vmatprep.subr.mxu0 0.0
        %586 = vmatpush1.msra.mxu0 0.0
        %587 = vmatprep.subr.mxu0 0.0
        %588 = vmatpush1.msra.mxu0 0.0
        %589 = vmatprep.subr.mxu0 0.0
        %590 = vmatpush1.msra.mxu0 0.0
        %591 = vmatprep.subr.mxu0 0.0
        %592 = vmatpush1.msra.mxu0 0.0
        %593 = vmatprep.subr.mxu0 0.0
        %594 = vmatpush1.msra.mxu0 0.0
        %595 = vmatprep.subr.mxu0 0.0
        %596 = vmatpush1.msra.mxu0 0.0
        %597 = vmatprep.subr.mxu0 0.0
        %598 = vmatpush1.msra.mxu0 0.0
        %599 = vmatprep.subr.mxu0 0.0
        %600 = vmatpush1.msra.mxu0 0.0
        %601 = vmatprep.subr.mxu0 0.0
        %602 = vmatpush1.msra.mxu0 0.0
        %603 = vmatprep.subr.mxu0 0.0
        %604 = vmatpush1.msra.mxu0 0.0
        %605 = vmatprep.subr.mxu0 0.0
        %606 = vmatpush1.msra.mxu0 0.0
        %607 = vmatprep.subr.mxu0 0.0
        %608 = vmatpush1.msra.mxu0 0.0
        %609 = vmatprep.subr.mxu0 0.0
        %610 = vmatpush1.msra.mxu0 0.0
        %611 = vmatprep.subr.mxu0 0.0
        %612 = vmatpush1.msra.mxu0 0.0
        %613 = vmatprep.subr.mxu0 0.0
        %614 = vmatpush1.msra.mxu0 0.0
        %615 = vmatprep.subr.mxu0 0.0
        %616 = vmatpush1.msra.mxu0 0.0
        %617 = vmatprep.subr.mxu0 0.0
        %618 = vmatpush1.msra.mxu0 0.0
        %619 = vmatprep.subr.mxu0 0.0
        %620 = vmatpush1.msra.mxu0 0.0
        %621 = vmatprep.subr.mxu0 0.0
        %622 = vmatpush1.msra.mxu0 0.0
        %623 = vmatprep.subr.mxu0 0.0
        %624 = vmatpush1.msra.mxu0 0.0
        %625 = vmatprep.subr.mxu0 0.0
        %626 = vmatpush1.msra.mxu0 0.0
        %627 = vmatprep.subr.mxu0 0.0
        %628 = vmatpush1.msra.mxu0 0.0
        %629 = vmatprep.mubr.f32.mxu0 0.0
        %630 = vmatmul.mubr.f32.gmra.mrb[0].mxu0 %v563
        %v631 = vpop.f32.mrb[0].mxu0
        %v632 = vadd.f32 %v559, %v631
        %v633 = vpop.f32.mrb[0].mxu0
        %634 = vdwg.mxu0
        %v635 = vmul.f32 %v632, 1.442695
        %v636 = vpow.pop %v635
        %v637 = vmul.f32 %v636, %v339
        %v639 = vrot.slane %v632, 4
        %v641 = vadd.f32 %v637, %v639
        %642 = vst [vmem:[%s324] sm:$0xf] %v337
        %s643 = scalar_lea.vmem %s324, 4 [#allocation3]
        %644 = vst [vmem:[%s643] sm:$0xf] %v641
        %v645 = vsel %vm421, %v632, 0.0
        %v646 = vrot.slane %v645, 4
        %v647 = vadd.f32 %v645, %v646
        %v648 = vrot.slane %v647, 2
        %v649 = vadd.f32 %v647, %v648
        %v650 = vrot.slane %v649, 1
        %v651 = vadd.f32 %v649, %v650
        %v652 = vadd.f32 %v651, 0.0
        %s653 = scalar_lea.vmem %s1, 64
        %v654 = vld [vmem:[%s653] sm:$0xff]
        %v655 = vld [vmem:[%s653 + $0x8] sm:$0xff]
        %v656 = vld [vmem:[%s653 + $0x10] sm:$0xff]
        %v657 = vld [vmem:[%s653 + $0x18] sm:$0xff]
        %v658 = vld [vmem:[%s653 + $0x20] sm:$0xff]
        %v659 = vld [vmem:[%s653 + $0x28] sm:$0xff]
        %v660 = vld [vmem:[%s653 + $0x30] sm:$0xff]
        %v661 = vld [vmem:[%s653 + $0x38] sm:$0xff]
        %s662 = scalar_lea.vmem %s2, 64
        %v663 = vld [vmem:[%s662] sm:$0xff]
        %v664 = vld [vmem:[%s662 + $0x8] sm:$0xff]
        %v665 = vld [vmem:[%s662 + $0x10] sm:$0xff]
        %v666 = vld [vmem:[%s662 + $0x18] sm:$0xff]
        %v667 = vld [vmem:[%s662 + $0x20] sm:$0xff]
        %v668 = vld [vmem:[%s662 + $0x28] sm:$0xff]
        %v669 = vld [vmem:[%s662 + $0x30] sm:$0xff]
        %v670 = vld [vmem:[%s662 + $0x38] sm:$0xff]
        %672 = vset.pattern.permute.xlu0 0
        %673 = vperm.xlu0 %672, %v663
        %v674 = vpop.permute.xlu0 %673
        %677 = vset.pattern.permute.xlu0 0
        %678 = vperm.xlu0 %677, %v664
        %v679 = vpop.permute.xlu0 %678
        %682 = vset.pattern.permute.xlu0 0
        %683 = vperm.xlu0 %682, %v665
        %v684 = vpop.permute.xlu0 %683
        %687 = vset.pattern.permute.xlu0 0
        %688 = vperm.xlu0 %687, %v666
        %v689 = vpop.permute.xlu0 %688
        %692 = vset.pattern.permute.xlu0 0
        %693 = vperm.xlu0 %692, %v667
        %v694 = vpop.permute.xlu0 %693
        %697 = vset.pattern.permute.xlu0 0
        %698 = vperm.xlu0 %697, %v668
        %v699 = vpop.permute.xlu0 %698
        %702 = vset.pattern.permute.xlu0 0
        %703 = vperm.xlu0 %702, %v669
        %v704 = vpop.permute.xlu0 %703
        %707 = vset.pattern.permute.xlu0 0
        %708 = vperm.xlu0 %707, %v670
        %v709 = vpop.permute.xlu0 %708
        %v712 = vsel %vm396, %v654, 0
        %v715 = vsel %vm396, %v655, 0
        %v718 = vsel %vm396, %v656, 0
        %v721 = vsel %vm396, %v657, 0
        %v724 = vsel %vm396, %v658, 0
        %v727 = vsel %vm396, %v659, 0
        %v730 = vsel %vm396, %v660, 0
        %v733 = vsel %vm396, %v661, 0
        %v736 = vsel %vm421, %v641, 0
        %738 = vmatprep.subr.mxu0 0.0
        %739 = vmatpush1.msra.mxu0 %v736
        %740 = vmatprep.subr.mxu0 0.0
        %741 = vmatpush1.msra.mxu0 0.0
        %742 = vmatprep.subr.mxu0 0.0
        %743 = vmatpush1.msra.mxu0 0.0
        %744 = vmatprep.subr.mxu0 0.0
        %745 = vmatpush1.msra.mxu0 0.0
        %746 = vmatprep.subr.mxu0 0.0
        %747 = vmatpush1.msra.mxu0 0.0
        %748 = vmatprep.subr.mxu0 0.0
        %749 = vmatpush1.msra.mxu0 0.0
        %750 = vmatprep.subr.mxu0 0.0
        %751 = vmatpush1.msra.mxu0 0.0
        %752 = vmatprep.subr.mxu0 0.0
        %753 = vmatpush1.msra.mxu0 0.0
        %754 = vmatprep.subr.mxu0 0.0
        %755 = vmatpush1.msra.mxu0 0.0
        %756 = vmatprep.subr.mxu0 0.0
        %757 = vmatpush1.msra.mxu0 0.0
        %758 = vmatprep.subr.mxu0 0.0
        %759 = vmatpush1.msra.mxu0 0.0
        %760 = vmatprep.subr.mxu0 0.0
        %761 = vmatpush1.msra.mxu0 0.0
        %762 = vmatprep.subr.mxu0 0.0
        %763 = vmatpush1.msra.mxu0 0.0
        %764 = vmatprep.subr.mxu0 0.0
        %765 = vmatpush1.msra.mxu0 0.0
        %766 = vmatprep.subr.mxu0 0.0
        %767 = vmatpush1.msra.mxu0 0.0
        %768 = vmatprep.subr.mxu0 0.0
        %769 = vmatpush1.msra.mxu0 0.0
        %770 = vmatprep.subr.mxu0 0.0
        %771 = vmatpush1.msra.mxu0 0.0
        %772 = vmatprep.subr.mxu0 0.0
        %773 = vmatpush1.msra.mxu0 0.0
        %774 = vmatprep.subr.mxu0 0.0
        %775 = vmatpush1.msra.mxu0 0.0
        %776 = vmatprep.subr.mxu0 0.0
        %777 = vmatpush1.msra.mxu0 0.0
        %778 = vmatprep.subr.mxu0 0.0
        %779 = vmatpush1.msra.mxu0 0.0
        %780 = vmatprep.subr.mxu0 0.0
        %781 = vmatpush1.msra.mxu0 0.0
        %782 = vmatprep.subr.mxu0 0.0
        %783 = vmatpush1.msra.mxu0 0.0
        %784 = vmatprep.subr.mxu0 0.0
        %785 = vmatpush1.msra.mxu0 0.0
        %786 = vmatprep.subr.mxu0 0.0
        %787 = vmatpush1.msra.mxu0 0.0
        %788 = vmatprep.subr.mxu0 0.0
        %789 = vmatpush1.msra.mxu0 0.0
        %790 = vmatprep.subr.mxu0 0.0
        %791 = vmatpush1.msra.mxu0 0.0
        %792 = vmatprep.subr.mxu0 0.0
        %793 = vmatpush1.msra.mxu0 0.0
        %794 = vmatprep.subr.mxu0 0.0
        %795 = vmatpush1.msra.mxu0 0.0
        %796 = vmatprep.subr.mxu0 0.0
        %797 = vmatpush1.msra.mxu0 0.0
        %798 = vmatprep.subr.mxu0 0.0
        %799 = vmatpush1.msra.mxu0 0.0
        %800 = vmatprep.subr.mxu0 0.0
        %801 = vmatpush1.msra.mxu0 0.0
        %802 = vmatprep.mubr.f32.mxu0 0.0
        %803 = vmatmul.mubr.f32.gmra.mrb[0].mxu0 %v712
        %v804 = vpop.f32.mrb[0].mxu0
        %v805 = vadd.f32 %v674, %v804
        %v806 = vpop.f32.mrb[0].mxu0
        %807 = vmatprep.mubr.f32.mxu0 0.0
        %808 = vmatmul.mubr.f32.gmra.mrb[0].mxu0 %v715
        %v809 = vpop.f32.mrb[0].mxu0
        %v810 = vadd.f32 %v679, %v809
        %v811 = vpop.f32.mrb[0].mxu0
        %812 = vmatprep.mubr.f32.mxu0 0.0
        %813 = vmatmul.mubr.f32.gmra.mrb[0].mxu0 %v718
        %v814 = vpop.f32.mrb[0].mxu0
        %v815 = vadd.f32 %v684, %v814
        %v816 = vpop.f32.mrb[0].mxu0
        %817 = vmatprep.mubr.f32.mxu0 0.0
        %818 = vmatmul.mubr.f32.gmra.mrb[0].mxu0 %v721
        %v819 = vpop.f32.mrb[0].mxu0
        %v820 = vadd.f32 %v689, %v819
        %v821 = vpop.f32.mrb[0].mxu0
        %822 = vmatprep.mubr.f32.mxu0 0.0
        %823 = vmatmul.mubr.f32.gmra.mrb[0].mxu0 %v724
        %v824 = vpop.f32.mrb[0].mxu0
        %v825 = vadd.f32 %v694, %v824
        %v826 = vpop.f32.mrb[0].mxu0
        %827 = vmatprep.mubr.f32.mxu0 0.0
        %828 = vmatmul.mubr.f32.gmra.mrb[0].mxu0 %v727
        %v829 = vpop.f32.mrb[0].mxu0
        %v830 = vadd.f32 %v699, %v829
        %v831 = vpop.f32.mrb[0].mxu0
        %832 = vmatprep.mubr.f32.mxu0 0.0
        %833 = vmatmul.mubr.f32.gmra.mrb[0].mxu0 %v730
        %v834 = vpop.f32.mrb[0].mxu0
        %v835 = vadd.f32 %v704, %v834
        %v836 = vpop.f32.mrb[0].mxu0
        %837 = vmatprep.mubr.f32.mxu0 0.0
        %838 = vmatmul.mubr.f32.gmra.mrb[0].mxu0 %v733
        %v839 = vpop.f32.mrb[0].mxu0
        %v840 = vadd.f32 %v709, %v839
        %v841 = vpop.f32.mrb[0].mxu0
        %842 = vdwg.mxu0
        %vm843 = vcmp.gt.f32.partialorder %v805, 0.0
        %vm844 = vcmp.gt.f32.partialorder %v810, 0.0
        %vm845 = vcmp.gt.f32.partialorder %v815, 0.0
        %vm846 = vcmp.gt.f32.partialorder %v820, 0.0
        %vm847 = vcmp.gt.f32.partialorder %v825, 0.0
        %vm848 = vcmp.gt.f32.partialorder %v830, 0.0
        %vm849 = vcmp.gt.f32.partialorder %v835, 0.0
        %vm850 = vcmp.gt.f32.partialorder %v840, 0.0
        %v851 = vmul.f32 %v805, 0.01
        %v852 = vmul.f32 %v810, 0.01
        %v853 = vmul.f32 %v815, 0.01
        %v854 = vmul.f32 %v820, 0.01
        %v855 = vmul.f32 %v825, 0.01
        %v856 = vmul.f32 %v830, 0.01
        %v857 = vmul.f32 %v835, 0.01
        %v858 = vmul.f32 %v840, 0.01
        %v859 = vsel %vm843, %v805, %v851
        %v860 = vsel %vm844, %v810, %v852
        %v861 = vsel %vm845, %v815, %v853
        %v862 = vsel %vm846, %v820, %v854
        %v863 = vsel %vm847, %v825, %v855
        %v864 = vsel %vm848, %v830, %v856
        %v865 = vsel %vm849, %v835, %v857
        %v866 = vsel %vm850, %v840, %v858
        %s867 = scalar_lea.vmem %s3, 8
        %v868 = vld [vmem:[%s867] sm:$0xff]
        %s869 = scalar_lea.vmem %s4, 8
        %v870 = vld [vmem:[%s869] sm:$0xff]
        %872 = vset.pattern.permute.xlu0 0
        %873 = vperm.xlu0 %872, %v870
        %v874 = vpop.permute.xlu0 %873
        %v877 = vsel %vm561, %v868, 0
        %879 = vmatprep.subr.mxu0 0.0
        %880 = vmatpush1.msra.mxu0 %v859
        %881 = vmatprep.subr.mxu0 0.0
        %882 = vmatpush1.msra.mxu0 %v860
        %883 = vmatprep.subr.mxu0 0.0
        %884 = vmatpush1.msra.mxu0 %v861
        %885 = vmatprep.subr.mxu0 0.0
        %886 = vmatpush1.msra.mxu0 %v862
        %887 = vmatprep.subr.mxu0 0.0
        %888 = vmatpush1.msra.mxu0 %v863
        %889 = vmatprep.subr.mxu0 0.0
        %890 = vmatpush1.msra.mxu0 %v864
        %891 = vmatprep.subr.mxu0 0.0
        %892 = vmatpush1.msra.mxu0 %v865
        %893 = vmatprep.subr.mxu0 0.0
        %894 = vmatpush1.msra.mxu0 %v866
        %895 = vmatprep.subr.mxu0 0.0
        %896 = vmatpush1.msra.mxu0 0.0
        %897 = vmatprep.subr.mxu0 0.0
        %898 = vmatpush1.msra.mxu0 0.0
        %899 = vmatprep.subr.mxu0 0.0
        %900 = vmatpush1.msra.mxu0 0.0
        %901 = vmatprep.subr.mxu0 0.0
        %902 = vmatpush1.msra.mxu0 0.0
        %903 = vmatprep.subr.mxu0 0.0
        %904 = vmatpush1.msra.mxu0 0.0
        %905 = vmatprep.subr.mxu0 0.0
        %906 = vmatpush1.msra.mxu0 0.0
        %907 = vmatprep.subr.mxu0 0.0
        %908 = vmatpush1.msra.mxu0 0.0
        %909 = vmatprep.subr.mxu0 0.0
        %910 = vmatpush1.msra.mxu0 0.0
        %911 = vmatprep.subr.mxu0 0.0
        %912 = vmatpush1.msra.mxu0 0.0
        %913 = vmatprep.subr.mxu0 0.0
        %914 = vmatpush1.msra.mxu0 0.0
        %915 = vmatprep.subr.mxu0 0.0
        %916 = vmatpush1.msra.mxu0 0.0
        %917 = vmatprep.subr.mxu0 0.0
        %918 = vmatpush1.msra.mxu0 0.0
        %919 = vmatprep.subr.mxu0 0.0
        %920 = vmatpush1.msra.mxu0 0.0
        %921 = vmatprep.subr.mxu0 0.0
        %922 = vmatpush1.msra.mxu0 0.0
        %923 = vmatprep.subr.mxu0 0.0
        %924 = vmatpush1.msra.mxu0 0.0
        %925 = vmatprep.subr.mxu0 0.0
        %926 = vmatpush1.msra.mxu0 0.0
        %927 = vmatprep.subr.mxu0 0.0
        %928 = vmatpush1.msra.mxu0 0.0
        %929 = vmatprep.subr.mxu0 0.0
        %930 = vmatpush1.msra.mxu0 0.0
        %931 = vmatprep.subr.mxu0 0.0
        %932 = vmatpush1.msra.mxu0 0.0
        %933 = vmatprep.subr.mxu0 0.0
        %934 = vmatpush1.msra.mxu0 0.0
        %935 = vmatprep.subr.mxu0 0.0
        %936 = vmatpush1.msra.mxu0 0.0
        %937 = vmatprep.subr.mxu0 0.0
        %938 = vmatpush1.msra.mxu0 0.0
        %939 = vmatprep.subr.mxu0 0.0
        %940 = vmatpush1.msra.mxu0 0.0
        %941 = vmatprep.subr.mxu0 0.0
        %942 = vmatpush1.msra.mxu0 0.0
        %943 = vmatprep.mubr.f32.mxu0 0.0
        %944 = vmatmul.mubr.f32.gmra.mrb[0].mxu0 %v877
        %v945 = vpop.f32.mrb[0].mxu0
        %v946 = vadd.f32 %v874, %v945
        %v947 = vpop.f32.mrb[0].mxu0
        %948 = vdwg.mxu0
        %v949 = vmul.f32 %v946, 1.442695
        %v950 = vpow.pop %v949
        %v951 = vmul.f32 %v950, %v337
        %v953 = vrot.slane %v946, 4
        %v955 = vadd.f32 %v951, %v953
        %s956 = scalar_lea.vmem %s324, 8 [#allocation3]
        %957 = vst [vmem:[%s956] sm:$0xf] %v955
        %s958 = scalar_lea.vmem %s324, 12 [#allocation3]
        %959 = vst [vmem:[%s958] sm:$0xf] %v641
        %v960 = vsel %vm421, %v946, 0.0
        %v961 = vrot.slane %v960, 4
        %v962 = vadd.f32 %v960, %v961
        %v963 = vrot.slane %v962, 2
        %v964 = vadd.f32 %v962, %v963
        %v965 = vrot.slane %v964, 1
        %v966 = vadd.f32 %v964, %v965
        %v967 = vadd.f32 %v652, %v966
        %s968 = scalar_lea.vmem %s1, 128
        %v969 = vld [vmem:[%s968] sm:$0xff]
        %v970 = vld [vmem:[%s968 + $0x8] sm:$0xff]
        %v971 = vld [vmem:[%s968 + $0x10] sm:$0xff]
        %v972 = vld [vmem:[%s968 + $0x18] sm:$0xff]
        %v973 = vld [vmem:[%s968 + $0x20] sm:$0xff]
        %v974 = vld [vmem:[%s968 + $0x28] sm:$0xff]
        %v975 = vld [vmem:[%s968 + $0x30] sm:$0xff]
        %v976 = vld [vmem:[%s968 + $0x38] sm:$0xff]
        %s977 = scalar_lea.vmem %s2, 128
        %v978 = vld [vmem:[%s977] sm:$0xff]
        %v979 = vld [vmem:[%s977 + $0x8] sm:$0xff]
        %v980 = vld [vmem:[%s977 + $0x10] sm:$0xff]
        %v981 = vld [vmem:[%s977 + $0x18] sm:$0xff]
        %v982 = vld [vmem:[%s977 + $0x20] sm:$0xff]
        %v983 = vld [vmem:[%s977 + $0x28] sm:$0xff]
        %v984 = vld [vmem:[%s977 + $0x30] sm:$0xff]
        %v985 = vld [vmem:[%s977 + $0x38] sm:$0xff]
        %987 = vset.pattern.permute.xlu0 0
        %988 = vperm.xlu0 %987, %v978
        %v989 = vpop.permute.xlu0 %988
        %992 = vset.pattern.permute.xlu0 0
        %993 = vperm.xlu0 %992, %v979
        %v994 = vpop.permute.xlu0 %993
        %997 = vset.pattern.permute.xlu0 0
        %998 = vperm.xlu0 %997, %v980
        %v999 = vpop.permute.xlu0 %998
        %1002 = vset.pattern.permute.xlu0 0
        %1003 = vperm.xlu0 %1002, %v981
        %v1004 = vpop.permute.xlu0 %1003
        %1007 = vset.pattern.permute.xlu0 0
        %1008 = vperm.xlu0 %1007, %v982
        %v1009 = vpop.permute.xlu0 %1008
        %1012 = vset.pattern.permute.xlu0 0
        %1013 = vperm.xlu0 %1012, %v983
        %v1014 = vpop.permute.xlu0 %1013
        %1017 = vset.pattern.permute.xlu0 0
        %1018 = vperm.xlu0 %1017, %v984
        %v1019 = vpop.permute.xlu0 %1018
        %1022 = vset.pattern.permute.xlu0 0
        %1023 = vperm.xlu0 %1022, %v985
        %v1024 = vpop.permute.xlu0 %1023
        %v1027 = vsel %vm396, %v969, 0
        %v1030 = vsel %vm396, %v970, 0
        %v1033 = vsel %vm396, %v971, 0
        %v1036 = vsel %vm396, %v972, 0
        %v1039 = vsel %vm396, %v973, 0
        %v1042 = vsel %vm396, %v974, 0
        %v1045 = vsel %vm396, %v975, 0
        %v1048 = vsel %vm396, %v976, 0
        %v1051 = vsel %vm421, %v955, 0
        %1053 = vmatprep.subr.mxu0 0.0
        %1054 = vmatpush1.msra.mxu0 %v1051
        %1055 = vmatprep.subr.mxu0 0.0
        %1056 = vmatpush1.msra.mxu0 0.0
        %1057 = vmatprep.subr.mxu0 0.0
        %1058 = vmatpush1.msra.mxu0 0.0
        %1059 = vmatprep.subr.mxu0 0.0
        %1060 = vmatpush1.msra.mxu0 0.0
        %1061 = vmatprep.subr.mxu0 0.0
        %1062 = vmatpush1.msra.mxu0 0.0
        %1063 = vmatprep.subr.mxu0 0.0
        %1064 = vmatpush1.msra.mxu0 0.0
        %1065 = vmatprep.subr.mxu0 0.0
        %1066 = vmatpush1.msra.mxu0 0.0
        %1067 = vmatprep.subr.mxu0 0.0
        %1068 = vmatpush1.msra.mxu0 0.0
        %1069 = vmatprep.subr.mxu0 0.0
        %1070 = vmatpush1.msra.mxu0 0.0
        %1071 = vmatprep.subr.mxu0 0.0
        %1072 = vmatpush1.msra.mxu0 0.0
        %1073 = vmatprep.subr.mxu0 0.0
        %1074 = vmatpush1.msra.mxu0 0.0
        %1075 = vmatprep.subr.mxu0 0.0
        %1076 = vmatpush1.msra.mxu0 0.0
        %1077 = vmatprep.subr.mxu0 0.0
        %1078 = vmatpush1.msra.mxu0 0.0
        %1079 = vmatprep.subr.mxu0 0.0
        %1080 = vmatpush1.msra.mxu0 0.0
        %1081 = vmatprep.subr.mxu0 0.0
        %1082 = vmatpush1.msra.mxu0 0.0
        %1083 = vmatprep.subr.mxu0 0.0
        %1084 = vmatpush1.msra.mxu0 0.0
        %1085 = vmatprep.subr.mxu0 0.0
        %1086 = vmatpush1.msra.mxu0 0.0
        %1087 = vmatprep.subr.mxu0 0.0
        %1088 = vmatpush1.msra.mxu0 0.0
        %1089 = vmatprep.subr.mxu0 0.0
        %1090 = vmatpush1.msra.mxu0 0.0
        %1091 = vmatprep.subr.mxu0 0.0
        %1092 = vmatpush1.msra.mxu0 0.0
        %1093 = vmatprep.subr.mxu0 0.0
        %1094 = vmatpush1.msra.mxu0 0.0
        %1095 = vmatprep.subr.mxu0 0.0
        %1096 = vmatpush1.msra.mxu0 0.0
        %1097 = vmatprep.subr.mxu0 0.0
        %1098 = vmatpush1.msra.mxu0 0.0
        %1099 = vmatprep.subr.mxu0 0.0
        %1100 = vmatpush1.msra.mxu0 0.0
        %1101 = vmatprep.subr.mxu0 0.0
        %1102 = vmatpush1.msra.mxu0 0.0
        %1103 = vmatprep.subr.mxu0 0.0
        %1104 = vmatpush1.msra.mxu0 0.0
        %1105 = vmatprep.subr.mxu0 0.0
        %1106 = vmatpush1.msra.mxu0 0.0
        %1107 = vmatprep.subr.mxu0 0.0
        %1108 = vmatpush1.msra.mxu0 0.0
        %1109 = vmatprep.subr.mxu0 0.0
        %1110 = vmatpush1.msra.mxu0 0.0
        %1111 = vmatprep.subr.mxu0 0.0
        %1112 = vmatpush1.msra.mxu0 0.0
        %1113 = vmatprep.subr.mxu0 0.0
        %1114 = vmatpush1.msra.mxu0 0.0
        %1115 = vmatprep.subr.mxu0 0.0
        %1116 = vmatpush1.msra.mxu0 0.0
        %1117 = vmatprep.mubr.f32.mxu0 0.0
        %1118 = vmatmul.mubr.f32.gmra.mrb[0].mxu0 %v1027
        %v1119 = vpop.f32.mrb[0].mxu0
        %v1120 = vadd.f32 %v989, %v1119
        %v1121 = vpop.f32.mrb[0].mxu0
        %1122 = vmatprep.mubr.f32.mxu0 0.0
        %1123 = vmatmul.mubr.f32.gmra.mrb[0].mxu0 %v1030
        %v1124 = vpop.f32.mrb[0].mxu0
        %v1125 = vadd.f32 %v994, %v1124
        %v1126 = vpop.f32.mrb[0].mxu0
        %1127 = vmatprep.mubr.f32.mxu0 0.0
        %1128 = vmatmul.mubr.f32.gmra.mrb[0].mxu0 %v1033
        %v1129 = vpop.f32.mrb[0].mxu0
        %v1130 = vadd.f32 %v999, %v1129
        %v1131 = vpop.f32.mrb[0].mxu0
        %1132 = vmatprep.mubr.f32.mxu0 0.0
        %1133 = vmatmul.mubr.f32.gmra.mrb[0].mxu0 %v1036
        %v1134 = vpop.f32.mrb[0].mxu0
        %v1135 = vadd.f32 %v1004, %v1134
        %v1136 = vpop.f32.mrb[0].mxu0
        %1137 = vmatprep.mubr.f32.mxu0 0.0
        %1138 = vmatmul.mubr.f32.gmra.mrb[0].mxu0 %v1039
        %v1139 = vpop.f32.mrb[0].mxu0
        %v1140 = vadd.f32 %v1009, %v1139
        %v1141 = vpop.f32.mrb[0].mxu0
        %1142 = vmatprep.mubr.f32.mxu0 0.0
        %1143 = vmatmul.mubr.f32.gmra.mrb[0].mxu0 %v1042
        %v1144 = vpop.f32.mrb[0].mxu0
        %v1145 = vadd.f32 %v1014, %v1144
        %v1146 = vpop.f32.mrb[0].mxu0
        %1147 = vmatprep.mubr.f32.mxu0 0.0
        %1148 = vmatmul.mubr.f32.gmra.mrb[0].mxu0 %v1045
        %v1149 = vpop.f32.mrb[0].mxu0
        %v1150 = vadd.f32 %v1019, %v1149
        %v1151 = vpop.f32.mrb[0].mxu0
        %1152 = vmatprep.mubr.f32.mxu0 0.0
        %1153 = vmatmul.mubr.f32.gmra.mrb[0].mxu0 %v1048
        %v1154 = vpop.f32.mrb[0].mxu0
        %v1155 = vadd.f32 %v1024, %v1154
        %v1156 = vpop.f32.mrb[0].mxu0
        %1157 = vdwg.mxu0
        %vm1158 = vcmp.gt.f32.partialorder %v1120, 0.0
        %vm1159 = vcmp.gt.f32.partialorder %v1125, 0.0
        %vm1160 = vcmp.gt.f32.partialorder %v1130, 0.0
        %vm1161 = vcmp.gt.f32.partialorder %v1135, 0.0
        %vm1162 = vcmp.gt.f32.partialorder %v1140, 0.0
        %vm1163 = vcmp.gt.f32.partialorder %v1145, 0.0
        %vm1164 = vcmp.gt.f32.partialorder %v1150, 0.0
        %vm1165 = vcmp.gt.f32.partialorder %v1155, 0.0
        %v1166 = vmul.f32 %v1120, 0.01
        %v1167 = vmul.f32 %v1125, 0.01
        %v1168 = vmul.f32 %v1130, 0.01
        %v1169 = vmul.f32 %v1135, 0.01
        %v1170 = vmul.f32 %v1140, 0.01
        %v1171 = vmul.f32 %v1145, 0.01
        %v1172 = vmul.f32 %v1150, 0.01
        %v1173 = vmul.f32 %v1155, 0.01
        %v1174 = vsel %vm1158, %v1120, %v1166
        %v1175 = vsel %vm1159, %v1125, %v1167
        %v1176 = vsel %vm1160, %v1130, %v1168
        %v1177 = vsel %vm1161, %v1135, %v1169
        %v1178 = vsel %vm1162, %v1140, %v1170
        %v1179 = vsel %vm1163, %v1145, %v1171
        %v1180 = vsel %vm1164, %v1150, %v1172
        %v1181 = vsel %vm1165, %v1155, %v1173
        %s1182 = scalar_lea.vmem %s3, 16
        %v1183 = vld [vmem:[%s1182] sm:$0xff]
        %s1184 = scalar_lea.vmem %s4, 16
        %v1185 = vld [vmem:[%s1184] sm:$0xff]
        %1187 = vset.pattern.permute.xlu0 0
        %1188 = vperm.xlu0 %1187, %v1185
        %v1189 = vpop.permute.xlu0 %1188
        %v1192 = vsel %vm561, %v1183, 0
        %1194 = vmatprep.subr.mxu0 0.0
        %1195 = vmatpush1.msra.mxu0 %v1174
        %1196 = vmatprep.subr.mxu0 0.0
        %1197 = vmatpush1.msra.mxu0 %v1175
        %1198 = vmatprep.subr.mxu0 0.0
        %1199 = vmatpush1.msra.mxu0 %v1176
        %1200 = vmatprep.subr.mxu0 0.0
        %1201 = vmatpush1.msra.mxu0 %v1177
        %1202 = vmatprep.subr.mxu0 0.0
        %1203 = vmatpush1.msra.mxu0 %v1178
        %1204 = vmatprep.subr.mxu0 0.0
        %1205 = vmatpush1.msra.mxu0 %v1179
        %1206 = vmatprep.subr.mxu0 0.0
        %1207 = vmatpush1.msra.mxu0 %v1180
        %1208 = vmatprep.subr.mxu0 0.0
        %1209 = vmatpush1.msra.mxu0 %v1181
        %1210 = vmatprep.subr.mxu0 0.0
        %1211 = vmatpush1.msra.mxu0 0.0
        %1212 = vmatprep.subr.mxu0 0.0
        %1213 = vmatpush1.msra.mxu0 0.0
        %1214 = vmatprep.subr.mxu0 0.0
        %1215 = vmatpush1.msra.mxu0 0.0
        %1216 = vmatprep.subr.mxu0 0.0
        %1217 = vmatpush1.msra.mxu0 0.0
        %1218 = vmatprep.subr.mxu0 0.0
        %1219 = vmatpush1.msra.mxu0 0.0
        %1220 = vmatprep.subr.mxu0 0.0
        %1221 = vmatpush1.msra.mxu0 0.0
        %1222 = vmatprep.subr.mxu0 0.0
        %1223 = vmatpush1.msra.mxu0 0.0
        %1224 = vmatprep.subr.mxu0 0.0
        %1225 = vmatpush1.msra.mxu0 0.0
        %1226 = vmatprep.subr.mxu0 0.0
        %1227 = vmatpush1.msra.mxu0 0.0
        %1228 = vmatprep.subr.mxu0 0.0
        %1229 = vmatpush1.msra.mxu0 0.0
        %1230 = vmatprep.subr.mxu0 0.0
        %1231 = vmatpush1.msra.mxu0 0.0
        %1232 = vmatprep.subr.mxu0 0.0
        %1233 = vmatpush1.msra.mxu0 0.0
        %1234 = vmatprep.subr.mxu0 0.0
        %1235 = vmatpush1.msra.mxu0 0.0
        %1236 = vmatprep.subr.mxu0 0.0
        %1237 = vmatpush1.msra.mxu0 0.0
        %1238 = vmatprep.subr.mxu0 0.0
        %1239 = vmatpush1.msra.mxu0 0.0
        %1240 = vmatprep.subr.mxu0 0.0
        %1241 = vmatpush1.msra.mxu0 0.0
        %1242 = vmatprep.subr.mxu0 0.0
        %1243 = vmatpush1.msra.mxu0 0.0
        %1244 = vmatprep.subr.mxu0 0.0
        %1245 = vmatpush1.msra.mxu0 0.0
        %1246 = vmatprep.subr.mxu0 0.0
        %1247 = vmatpush1.msra.mxu0 0.0
        %1248 = vmatprep.subr.mxu0 0.0
        %1249 = vmatpush1.msra.mxu0 0.0
        %1250 = vmatprep.subr.mxu0 0.0
        %1251 = vmatpush1.msra.mxu0 0.0
        %1252 = vmatprep.subr.mxu0 0.0
        %1253 = vmatpush1.msra.mxu0 0.0
        %1254 = vmatprep.subr.mxu0 0.0
        %1255 = vmatpush1.msra.mxu0 0.0
        %1256 = vmatprep.subr.mxu0 0.0
        %1257 = vmatpush1.msra.mxu0 0.0
        %1258 = vmatprep.mubr.f32.mxu0 0.0
        %1259 = vmatmul.mubr.f32.gmra.mrb[0].mxu0 %v1192
        %v1260 = vpop.f32.mrb[0].mxu0
        %v1261 = vadd.f32 %v1189, %v1260
        %v1262 = vpop.f32.mrb[0].mxu0
        %1263 = vdwg.mxu0
        %v1264 = vmul.f32 %v1261, 1.442695
        %v1265 = vpow.pop %v1264
        %v1266 = vmul.f32 %v1265, %v641
        %v1268 = vrot.slane %v1261, 4
        %v1270 = vadd.f32 %v1266, %v1268
        %s1271 = scalar_lea.vmem %s324, 16 [#allocation3]
        %1272 = vst [vmem:[%s1271] sm:$0xf] %v955
        %s1273 = scalar_lea.vmem %s324, 20 [#allocation3]
        %1274 = vst [vmem:[%s1273] sm:$0xf] %v1270
        %v1275 = vsel %vm421, %v1261, 0.0
        %v1276 = vrot.slane %v1275, 4
        %v1277 = vadd.f32 %v1275, %v1276
        %v1278 = vrot.slane %v1277, 2
        %v1279 = vadd.f32 %v1277, %v1278
        %v1280 = vrot.slane %v1279, 1
        %v1281 = vadd.f32 %v1279, %v1280
        %v1282 = vadd.f32 %v967, %v1281
        %s1283 = scalar_lea.vmem %s1, 192
        %v1284 = vld [vmem:[%s1283] sm:$0xff]
        %v1285 = vld [vmem:[%s1283 + $0x8] sm:$0xff]
        %v1286 = vld [vmem:[%s1283 + $0x10] sm:$0xff]
        %v1287 = vld [vmem:[%s1283 + $0x18] sm:$0xff]
        %v1288 = vld [vmem:[%s1283 + $0x20] sm:$0xff]
        %v1289 = vld [vmem:[%s1283 + $0x28] sm:$0xff]
        %v1290 = vld [vmem:[%s1283 + $0x30] sm:$0xff]
        %v1291 = vld [vmem:[%s1283 + $0x38] sm:$0xff]
        %s1292 = scalar_lea.vmem %s2, 192
        %v1293 = vld [vmem:[%s1292] sm:$0xff]
        %v1294 = vld [vmem:[%s1292 + $0x8] sm:$0xff]
        %v1295 = vld [vmem:[%s1292 + $0x10] sm:$0xff]
        %v1296 = vld [vmem:[%s1292 + $0x18] sm:$0xff]
        %v1297 = vld [vmem:[%s1292 + $0x20] sm:$0xff]
        %v1298 = vld [vmem:[%s1292 + $0x28] sm:$0xff]
        %v1299 = vld [vmem:[%s1292 + $0x30] sm:$0xff]
        %v1300 = vld [vmem:[%s1292 + $0x38] sm:$0xff]
        %1302 = vset.pattern.permute.xlu0 0
        %1303 = vperm.xlu0 %1302, %v1293
        %v1304 = vpop.permute.xlu0 %1303
        %1307 = vset.pattern.permute.xlu0 0
        %1308 = vperm.xlu0 %1307, %v1294
        %v1309 = vpop.permute.xlu0 %1308
        %1312 = vset.pattern.permute.xlu0 0
        %1313 = vperm.xlu0 %1312, %v1295
        %v1314 = vpop.permute.xlu0 %1313
        %1317 = vset.pattern.permute.xlu0 0
        %1318 = vperm.xlu0 %1317, %v1296
        %v1319 = vpop.permute.xlu0 %1318
        %1322 = vset.pattern.permute.xlu0 0
        %1323 = vperm.xlu0 %1322, %v1297
        %v1324 = vpop.permute.xlu0 %1323
        %1327 = vset.pattern.permute.xlu0 0
        %1328 = vperm.xlu0 %1327, %v1298
        %v1329 = vpop.permute.xlu0 %1328
        %1332 = vset.pattern.permute.xlu0 0
        %1333 = vperm.xlu0 %1332, %v1299
        %v1334 = vpop.permute.xlu0 %1333
        %1337 = vset.pattern.permute.xlu0 0
        %1338 = vperm.xlu0 %1337, %v1300
        %v1339 = vpop.permute.xlu0 %1338
        %v1342 = vsel %vm396, %v1284, 0
        %v1345 = vsel %vm396, %v1285, 0
        %v1348 = vsel %vm396, %v1286, 0
        %v1351 = vsel %vm396, %v1287, 0
        %v1354 = vsel %vm396, %v1288, 0
        %v1357 = vsel %vm396, %v1289, 0
        %v1360 = vsel %vm396, %v1290, 0
        %v1363 = vsel %vm396, %v1291, 0
        %v1366 = vsel %vm421, %v1270, 0
        %1368 = vmatprep.subr.mxu0 0.0
        %1369 = vmatpush1.msra.mxu0 %v1366
        %1370 = vmatprep.subr.mxu0 0.0
        %1371 = vmatpush1.msra.mxu0 0.0
        %1372 = vmatprep.subr.mxu0 0.0
        %1373 = vmatpush1.msra.mxu0 0.0
        %1374 = vmatprep.subr.mxu0 0.0
        %1375 = vmatpush1.msra.mxu0 0.0
        %1376 = vmatprep.subr.mxu0 0.0
        %1377 = vmatpush1.msra.mxu0 0.0
        %1378 = vmatprep.subr.mxu0 0.0
        %1379 = vmatpush1.msra.mxu0 0.0
        %1380 = vmatprep.subr.mxu0 0.0
        %1381 = vmatpush1.msra.mxu0 0.0
        %1382 = vmatprep.subr.mxu0 0.0
        %1383 = vmatpush1.msra.mxu0 0.0
        %1384 = vmatprep.subr.mxu0 0.0
        %1385 = vmatpush1.msra.mxu0 0.0
        %1386 = vmatprep.subr.mxu0 0.0
        %1387 = vmatpush1.msra.mxu0 0.0
        %1388 = vmatprep.subr.mxu0 0.0
        %1389 = vmatpush1.msra.mxu0 0.0
        %1390 = vmatprep.subr.mxu0 0.0
        %1391 = vmatpush1.msra.mxu0 0.0
        %1392 = vmatprep.subr.mxu0 0.0
        %1393 = vmatpush1.msra.mxu0 0.0
        %1394 = vmatprep.subr.mxu0 0.0
        %1395 = vmatpush1.msra.mxu0 0.0
        %1396 = vmatprep.subr.mxu0 0.0
        %1397 = vmatpush1.msra.mxu0 0.0
        %1398 = vmatprep.subr.mxu0 0.0
        %1399 = vmatpush1.msra.mxu0 0.0
        %1400 = vmatprep.subr.mxu0 0.0
        %1401 = vmatpush1.msra.mxu0 0.0
        %1402 = vmatprep.subr.mxu0 0.0
        %1403 = vmatpush1.msra.mxu0 0.0
        %1404 = vmatprep.subr.mxu0 0.0
        %1405 = vmatpush1.msra.mxu0 0.0
        %1406 = vmatprep.subr.mxu0 0.0
        %1407 = vmatpush1.msra.mxu0 0.0
        %1408 = vmatprep.subr.mxu0 0.0
        %1409 = vmatpush1.msra.mxu0 0.0
        %1410 = vmatprep.subr.mxu0 0.0
        %1411 = vmatpush1.msra.mxu0 0.0
        %1412 = vmatprep.subr.mxu0 0.0
        %1413 = vmatpush1.msra.mxu0 0.0
        %1414 = vmatprep.subr.mxu0 0.0
        %1415 = vmatpush1.msra.mxu0 0.0
        %1416 = vmatprep.subr.mxu0 0.0
        %1417 = vmatpush1.msra.mxu0 0.0
        %1418 = vmatprep.subr.mxu0 0.0
        %1419 = vmatpush1.msra.mxu0 0.0
        %1420 = vmatprep.subr.mxu0 0.0
        %1421 = vmatpush1.msra.mxu0 0.0
        %1422 = vmatprep.subr.mxu0 0.0
        %1423 = vmatpush1.msra.mxu0 0.0
        %1424 = vmatprep.subr.mxu0 0.0
        %1425 = vmatpush1.msra.mxu0 0.0
        %1426 = vmatprep.subr.mxu0 0.0
        %1427 = vmatpush1.msra.mxu0 0.0
        %1428 = vmatprep.subr.mxu0 0.0
        %1429 = vmatpush1.msra.mxu0 0.0
        %1430 = vmatprep.subr.mxu0 0.0
        %1431 = vmatpush1.msra.mxu0 0.0
        %1432 = vmatprep.mubr.f32.mxu0 0.0
        %1433 = vmatmul.mubr.f32.gmra.mrb[0].mxu0 %v1342
        %v1434 = vpop.f32.mrb[0].mxu0
        %v1435 = vadd.f32 %v1304, %v1434
        %v1436 = vpop.f32.mrb[0].mxu0
        %1437 = vmatprep.mubr.f32.mxu0 0.0
        %1438 = vmatmul.mubr.f32.gmra.mrb[0].mxu0 %v1345
        %v1439 = vpop.f32.mrb[0].mxu0
        %v1440 = vadd.f32 %v1309, %v1439
        %v1441 = vpop.f32.mrb[0].mxu0
        %1442 = vmatprep.mubr.f32.mxu0 0.0
        %1443 = vmatmul.mubr.f32.gmra.mrb[0].mxu0 %v1348
        %v1444 = vpop.f32.mrb[0].mxu0
        %v1445 = vadd.f32 %v1314, %v1444
        %v1446 = vpop.f32.mrb[0].mxu0
        %1447 = vmatprep.mubr.f32.mxu0 0.0
        %1448 = vmatmul.mubr.f32.gmra.mrb[0].mxu0 %v1351
        %v1449 = vpop.f32.mrb[0].mxu0
        %v1450 = vadd.f32 %v1319, %v1449
        %v1451 = vpop.f32.mrb[0].mxu0
        %1452 = vmatprep.mubr.f32.mxu0 0.0
        %1453 = vmatmul.mubr.f32.gmra.mrb[0].mxu0 %v1354
        %v1454 = vpop.f32.mrb[0].mxu0
        %v1455 = vadd.f32 %v1324, %v1454
        %v1456 = vpop.f32.mrb[0].mxu0
        %1457 = vmatprep.mubr.f32.mxu0 0.0
        %1458 = vmatmul.mubr.f32.gmra.mrb[0].mxu0 %v1357
        %v1459 = vpop.f32.mrb[0].mxu0
        %v1460 = vadd.f32 %v1329, %v1459
        %v1461 = vpop.f32.mrb[0].mxu0
        %1462 = vmatprep.mubr.f32.mxu0 0.0
        %1463 = vmatmul.mubr.f32.gmra.mrb[0].mxu0 %v1360
        %v1464 = vpop.f32.mrb[0].mxu0
        %v1465 = vadd.f32 %v1334, %v1464
        %v1466 = vpop.f32.mrb[0].mxu0
        %1467 = vmatprep.mubr.f32.mxu0 0.0
        %1468 = vmatmul.mubr.f32.gmra.mrb[0].mxu0 %v1363
        %v1469 = vpop.f32.mrb[0].mxu0
        %v1470 = vadd.f32 %v1339, %v1469
        %v1471 = vpop.f32.mrb[0].mxu0
        %1472 = vdwg.mxu0
        %vm1473 = vcmp.gt.f32.partialorder %v1435, 0.0
        %vm1474 = vcmp.gt.f32.partialorder %v1440, 0.0
        %vm1475 = vcmp.gt.f32.partialorder %v1445, 0.0
        %vm1476 = vcmp.gt.f32.partialorder %v1450, 0.0
        %vm1477 = vcmp.gt.f32.partialorder %v1455, 0.0
        %vm1478 = vcmp.gt.f32.partialorder %v1460, 0.0
        %vm1479 = vcmp.gt.f32.partialorder %v1465, 0.0
        %vm1480 = vcmp.gt.f32.partialorder %v1470, 0.0
        %v1481 = vmul.f32 %v1435, 0.01
        %v1482 = vmul.f32 %v1440, 0.01
        %v1483 = vmul.f32 %v1445, 0.01
        %v1484 = vmul.f32 %v1450, 0.01
        %v1485 = vmul.f32 %v1455, 0.01
        %v1486 = vmul.f32 %v1460, 0.01
        %v1487 = vmul.f32 %v1465, 0.01
        %v1488 = vmul.f32 %v1470, 0.01
        %v1489 = vsel %vm1473, %v1435, %v1481
        %v1490 = vsel %vm1474, %v1440, %v1482
        %v1491 = vsel %vm1475, %v1445, %v1483
        %v1492 = vsel %vm1476, %v1450, %v1484
        %v1493 = vsel %vm1477, %v1455, %v1485
        %v1494 = vsel %vm1478, %v1460, %v1486
        %v1495 = vsel %vm1479, %v1465, %v1487
        %v1496 = vsel %vm1480, %v1470, %v1488
        %s1497 = scalar_lea.vmem %s3, 24
        %v1498 = vld [vmem:[%s1497] sm:$0xff]
        %s1499 = scalar_lea.vmem %s4, 24
        %v1500 = vld [vmem:[%s1499] sm:$0xff]
        %1502 = vset.pattern.permute.xlu0 0
        %1503 = vperm.xlu0 %1502, %v1500
        %v1504 = vpop.permute.xlu0 %1503
        %v1507 = vsel %vm561, %v1498, 0
        %1509 = vmatprep.subr.mxu0 0.0
        %1510 = vmatpush1.msra.mxu0 %v1489
        %1511 = vmatprep.subr.mxu0 0.0
        %1512 = vmatpush1.msra.mxu0 %v1490
        %1513 = vmatprep.subr.mxu0 0.0
        %1514 = vmatpush1.msra.mxu0 %v1491
        %1515 = vmatprep.subr.mxu0 0.0
        %1516 = vmatpush1.msra.mxu0 %v1492
        %1517 = vmatprep.subr.mxu0 0.0
        %1518 = vmatpush1.msra.mxu0 %v1493
        %1519 = vmatprep.subr.mxu0 0.0
        %1520 = vmatpush1.msra.mxu0 %v1494
        %1521 = vmatprep.subr.mxu0 0.0
        %1522 = vmatpush1.msra.mxu0 %v1495
        %1523 = vmatprep.subr.mxu0 0.0
        %1524 = vmatpush1.msra.mxu0 %v1496
        %1525 = vmatprep.subr.mxu0 0.0
        %1526 = vmatpush1.msra.mxu0 0.0
        %1527 = vmatprep.subr.mxu0 0.0
        %1528 = vmatpush1.msra.mxu0 0.0
        %1529 = vmatprep.subr.mxu0 0.0
        %1530 = vmatpush1.msra.mxu0 0.0
        %1531 = vmatprep.subr.mxu0 0.0
        %1532 = vmatpush1.msra.mxu0 0.0
        %1533 = vmatprep.subr.mxu0 0.0
        %1534 = vmatpush1.msra.mxu0 0.0
        %1535 = vmatprep.subr.mxu0 0.0
        %1536 = vmatpush1.msra.mxu0 0.0
        %1537 = vmatprep.subr.mxu0 0.0
        %1538 = vmatpush1.msra.mxu0 0.0
        %1539 = vmatprep.subr.mxu0 0.0
        %1540 = vmatpush1.msra.mxu0 0.0
        %1541 = vmatprep.subr.mxu0 0.0
        %1542 = vmatpush1.msra.mxu0 0.0
        %1543 = vmatprep.subr.mxu0 0.0
        %1544 = vmatpush1.msra.mxu0 0.0
        %1545 = vmatprep.subr.mxu0 0.0
        %1546 = vmatpush1.msra.mxu0 0.0
        %1547 = vmatprep.subr.mxu0 0.0
        %1548 = vmatpush1.msra.mxu0 0.0
        %1549 = vmatprep.subr.mxu0 0.0
        %1550 = vmatpush1.msra.mxu0 0.0
        %1551 = vmatprep.subr.mxu0 0.0
        %1552 = vmatpush1.msra.mxu0 0.0
        %1553 = vmatprep.subr.mxu0 0.0
        %1554 = vmatpush1.msra.mxu0 0.0
        %1555 = vmatprep.subr.mxu0 0.0
        %1556 = vmatpush1.msra.mxu0 0.0
        %1557 = vmatprep.subr.mxu0 0.0
        %1558 = vmatpush1.msra.mxu0 0.0
        %1559 = vmatprep.subr.mxu0 0.0
        %1560 = vmatpush1.msra.mxu0 0.0
        %1561 = vmatprep.subr.mxu0 0.0
        %1562 = vmatpush1.msra.mxu0 0.0
        %1563 = vmatprep.subr.mxu0 0.0
        %1564 = vmatpush1.msra.mxu0 0.0
        %1565 = vmatprep.subr.mxu0 0.0
        %1566 = vmatpush1.msra.mxu0 0.0
        %1567 = vmatprep.subr.mxu0 0.0
        %1568 = vmatpush1.msra.mxu0 0.0
        %1569 = vmatprep.subr.mxu0 0.0
        %1570 = vmatpush1.msra.mxu0 0.0
        %1571 = vmatprep.subr.mxu0 0.0
        %1572 = vmatpush1.msra.mxu0 0.0
        %1573 = vmatprep.mubr.f32.mxu0 0.0
        %1574 = vmatmul.mubr.f32.gmra.mrb[0].mxu0 %v1507
        %v1575 = vpop.f32.mrb[0].mxu0
        %v1576 = vadd.f32 %v1504, %v1575
        %v1577 = vpop.f32.mrb[0].mxu0
        %1578 = vdwg.mxu0
        %v1579 = vmul.f32 %v1576, 1.442695
        %v1580 = vpow.pop %v1579
        %v1581 = vmul.f32 %v1580, %v955
        %v1583 = vrot.slane %v1576, 4
        %v1585 = vadd.f32 %v1581, %v1583
        %s1586 = scalar_lea.vmem %s324, 24 [#allocation3]
        %1587 = vst [vmem:[%s1586] sm:$0xf] %v1585
        %s1588 = scalar_lea.vmem %s324, 28 [#allocation3]
        %1589 = vst [vmem:[%s1588] sm:$0xf] %v1270
        %v1590 = vsel %vm421, %v1576, 0.0
        %v1591 = vrot.slane %v1590, 4
        %v1592 = vadd.f32 %v1590, %v1591
        %v1593 = vrot.slane %v1592, 2
        %v1594 = vadd.f32 %v1592, %v1593
        %v1595 = vrot.slane %v1594, 1
        %v1596 = vadd.f32 %v1594, %v1595
        %v1597 = vadd.f32 %v1282, %v1596
        %1598 = vst [vmem:[%s330] sm:$0x1] %v1597
        %v1599 = vmul.f32 %v1585, %v1585
        %v1600 = vsel %vm421, %v1599, 0.0
        %v1601 = vrot.slane %v1600, 4
        %v1602 = vadd.f32 %v1600, %v1601
        %v1603 = vrot.slane %v1602, 2
        %v1604 = vadd.f32 %v1602, %v1603
        %v1605 = vrot.slane %v1604, 1
        %v1606 = vadd.f32 %v1604, %v1605
        %v1607 = vmul.f32 %v1270, %v1270
        %v1608 = vsel %vm421, %v1607, 0.0
        %v1609 = vrot.slane %v1608, 4
        %v1610 = vadd.f32 %v1608, %v1609
        %v1611 = vrot.slane %v1610, 2
        %v1612 = vadd.f32 %v1610, %v1611
        %v1613 = vrot.slane %v1612, 1
        %v1614 = vadd.f32 %v1612, %v1613
        %v1615 = vadd.f32 %v1606, %v1614
        %v1616 = vmul.f32 %v1615, -0.5
        %v1617 = vsub.f32 %v1616, 7.351508
        %1618 = vst [vmem:[%s336] sm:$0x1] %v1617
        %s1619 = sand.u32 %s143, 1
        %s1620 = sand.u32 %s143, 1
        %s1621 = smul.addr %s1620, 32
        %s1622 = scalar_lea.vmem [#allocation3], %s1621
        %s1623 = sand.u32 %s169, 1
        %s1624 = scalar_lea.sflag [#allocation5], %s1623
        %s1625 = sand.u32 %s169, 1
        %s1626 = scalar_lea.vmem [#allocation4], %s1625
        %s1627 = sand.u32 %s195, 1
        %s1628 = scalar_lea.sflag [#allocation7], %s1627
        %s1629 = sand.u32 %s195, 1
        %s1630 = scalar_lea.vmem [#allocation6], %s1629
        // Predicated region
        $region82: #{normalizing_flow_model_forward.1} parent=76 // pred_check
          %p1631 = pneg %p153
        $region83: #{normalizing_flow_model_forward.1} parent=76 // pred_check_branch
          %1633 = sbr.rel (%p1631) target = $region85
        $region84: #{normalizing_flow_model_forward.1} parent=76 // pred_region
          %s1634 = smul.addr %s25, 4
          %s1635 = scalar_lea.vmem %s5, %s1634
          // Predicated region
          $region86: #{normalizing_flow_model_forward.1} parent=84 // pred_check
            _
          $region87: #{normalizing_flow_model_forward.1} parent=84 // pred_check_branch
            %1637 = sbr.rel (0) target = $region89
          $region88: #{normalizing_flow_model_forward.1} parent=84 // pred_region
            // Predicated region
            $region90: #{normalizing_flow_model_forward.1} parent=88 // pred_check
              _
            $region91: #{normalizing_flow_model_forward.1} parent=88 // pred_check_branch
              %1639 = sbr.rel target = $region93
            $region92: #{normalizing_flow_model_forward.1} parent=88 // pred_region
              // Predicated region
              $region105: #{normalizing_flow_model_forward.1} parent=92 // pred_check
                _
              $region106: #{normalizing_flow_model_forward.1} parent=92 // pred_check_branch
                %1668 = sbr.rel (0) target = $region108
              $region107: #{normalizing_flow_model_forward.1} parent=92 // pred_region
                loop: start=0, step=1, limit=1
                $region109: #{normalizing_flow_model_forward.1} parent=107 // loop_pre_header
                  _
                $region110: #{normalizing_flow_model_forward.1} parent=107 // loop_header
                  %s1670 = sphi 0, %s1674
                  %p1671 = scmp.ge.s32.totalorder %s1670, 1
                  %s1675 = sphi %s1622, %s1622
                  %s1676 = sphi %s1635, %s1635
                $region111: #{normalizing_flow_model_forward.1} parent=107 // loop_header_branch
                  %1673 = sbr.rel (%p1671) target = $region115
                $region112: #{normalizing_flow_model_forward.1} parent=107 // loop_body
                  _
                $region113: #{normalizing_flow_model_forward.1} parent=107 // loop_footer
                  %s1674 = sadd.s32 1, %s1670
                $region114: #{normalizing_flow_model_forward.1} parent=107 // loop_footer_branch
                  %1669 = sbr.rel target = $region110
                $region115: #{normalizing_flow_model_forward.1} parent=107 // loop_exit
                  _
                loop: start=0, step=1, limit=1
                $region116: #{normalizing_flow_model_forward.1} parent=107 // loop_pre_header
                  _
                $region117: #{normalizing_flow_model_forward.1} parent=107 // loop_header
                  %s1679 = sphi 0, %s1683
                  %p1680 = scmp.ge.s32.totalorder %s1679, 1
                  %s1684 = sphi %s1622, %s1622
                  %s1685 = sphi %s1635, %s1635
                $region118: #{normalizing_flow_model_forward.1} parent=107 // loop_header_branch
                  %1682 = sbr.rel (%p1680) target = $region122
                $region119: #{normalizing_flow_model_forward.1} parent=107 // loop_body
                  %v1686 = vld [vmem:[%s1684] sm:$0xf]
                  %1687 = vst [vmem:[%s1685] sm:$0xf] %v1686
                  %v1688 = vld [vmem:[%s1684 + $0x4] sm:$0xf]
                  %1689 = vst [vmem:[%s1685 + $0x8] sm:$0xf] %v1688
                  %v1690 = vld [vmem:[%s1684 + $0x8] sm:$0xf]
                  %1691 = vst [vmem:[%s1685 + $0x10] sm:$0xf] %v1690
                  %v1692 = vld [vmem:[%s1684 + $0xc] sm:$0xf]
                  %1693 = vst [vmem:[%s1685 + $0x18] sm:$0xf] %v1692
                  %v1694 = vld [vmem:[%s1684 + $0x10] sm:$0xf]
                  %1695 = vst [vmem:[%s1685 + $0x20] sm:$0xf] %v1694
                  %v1696 = vld [vmem:[%s1684 + $0x14] sm:$0xf]
                  %1697 = vst [vmem:[%s1685 + $0x28] sm:$0xf] %v1696
                  %v1698 = vld [vmem:[%s1684 + $0x18] sm:$0xf]
                  %1699 = vst [vmem:[%s1685 + $0x30] sm:$0xf] %v1698
                  %v1700 = vld [vmem:[%s1684 + $0x1c] sm:$0xf]
                  %1701 = vst [vmem:[%s1685 + $0x38] sm:$0xf] %v1700
                $region120: #{normalizing_flow_model_forward.1} parent=107 // loop_footer
                  %s1683 = sadd.s32 1, %s1679
                $region121: #{normalizing_flow_model_forward.1} parent=107 // loop_footer_branch
                  %1678 = sbr.rel target = $region117
                $region122: #{normalizing_flow_model_forward.1} parent=107 // loop_exit
                  _
              $region108: #{normalizing_flow_model_forward.1} parent=92 // pred_fallthru
                _
            $region93: #{normalizing_flow_model_forward.1} parent=88 // pred_fallthru
              _
            // Predicated region
            $region94: #{normalizing_flow_model_forward.1} parent=88 // pred_check
              _
            $region95: #{normalizing_flow_model_forward.1} parent=88 // pred_check_branch
              %1641 = sbr.rel (0) target = $region97
            $region96: #{normalizing_flow_model_forward.1} parent=88 // pred_region
              loop: start=0, step=1, limit=1
              $region98: #{normalizing_flow_model_forward.1} parent=96 // loop_pre_header
                _
              $region99: #{normalizing_flow_model_forward.1} parent=96 // loop_header
                %s1644 = sphi 0, %s1648
                %p1645 = scmp.ge.s32.totalorder %s1644, 1
                %s1649 = sphi %s1622, %s1622
                %s1650 = sphi %s1635, %s1635
              $region100: #{normalizing_flow_model_forward.1} parent=96 // loop_header_branch
                %1647 = sbr.rel (%p1645) target = $region104
              $region101: #{normalizing_flow_model_forward.1} parent=96 // loop_body
                %v1651 = vld [vmem:[%s1649] sm:$0xf]
                %1652 = vst [vmem:[%s1650] sm:$0xf] %v1651
                %v1653 = vld [vmem:[%s1649 + $0x4] sm:$0xf]
                %1654 = vst [vmem:[%s1650 + $0x8] sm:$0xf] %v1653
                %v1655 = vld [vmem:[%s1649 + $0x8] sm:$0xf]
                %1656 = vst [vmem:[%s1650 + $0x10] sm:$0xf] %v1655
                %v1657 = vld [vmem:[%s1649 + $0xc] sm:$0xf]
                %1658 = vst [vmem:[%s1650 + $0x18] sm:$0xf] %v1657
                %v1659 = vld [vmem:[%s1649 + $0x10] sm:$0xf]
                %1660 = vst [vmem:[%s1650 + $0x20] sm:$0xf] %v1659
                %v1661 = vld [vmem:[%s1649 + $0x14] sm:$0xf]
                %1662 = vst [vmem:[%s1650 + $0x28] sm:$0xf] %v1661
                %v1663 = vld [vmem:[%s1649 + $0x18] sm:$0xf]
                %1664 = vst [vmem:[%s1650 + $0x30] sm:$0xf] %v1663
                %v1665 = vld [vmem:[%s1649 + $0x1c] sm:$0xf]
                %1666 = vst [vmem:[%s1650 + $0x38] sm:$0xf] %v1665
              $region102: #{normalizing_flow_model_forward.1} parent=96 // loop_footer
                %s1648 = sadd.s32 1, %s1644
              $region103: #{normalizing_flow_model_forward.1} parent=96 // loop_footer_branch
                %1643 = sbr.rel target = $region99
              $region104: #{normalizing_flow_model_forward.1} parent=96 // loop_exit
                _
            $region97: #{normalizing_flow_model_forward.1} parent=88 // pred_fallthru
              _
          $region89: #{normalizing_flow_model_forward.1} parent=84 // pred_fallthru
            _
          %1702 = vnop
        $region85: #{normalizing_flow_model_forward.1} parent=76 // pred_fallthru
          _
        // Predicated region
        $region123: #{normalizing_flow_model_forward.1} parent=76 // pred_check
          %p1703 = pneg %p179
        $region124: #{normalizing_flow_model_forward.1} parent=76 // pred_check_branch
          %1705 = sbr.rel (%p1703) target = $region126
        $region125: #{normalizing_flow_model_forward.1} parent=76 // pred_region
          %s1707 = ssub.s32 16, 16
          %1708 = vsyncadd %s1624, %s1707
          %s1709 = smul.addr %s25, 16
          %s1710 = scalar_lea.hbm %s6, %s1709
          %s1712 = sshll.u32 %s1626, 4
          %s1713 = int_to_ptr.vmem [resolvable:$true] %s1712
          %1715 = dma.vmem_to_hbm [thread:$0]  %s1713, 16, %s1710, %s1624
        $region126: #{normalizing_flow_model_forward.1} parent=76 // pred_fallthru
          _
        // Predicated region
        $region127: #{normalizing_flow_model_forward.1} parent=76 // pred_check
          %p1716 = pneg %p205
        $region128: #{normalizing_flow_model_forward.1} parent=76 // pred_check_branch
          %1718 = sbr.rel (%p1716) target = $region130
        $region129: #{normalizing_flow_model_forward.1} parent=76 // pred_region
          %s1720 = ssub.s32 16, 16
          %1721 = vsyncadd %s1628, %s1720
          %s1722 = smul.addr %s25, 16
          %s1723 = scalar_lea.hbm %s7, %s1722
          %s1725 = sshll.u32 %s1630, 4
          %s1726 = int_to_ptr.vmem [resolvable:$true] %s1725
          %1728 = dma.vmem_to_hbm [thread:$0]  %s1726, 16, %s1723, %s1628
        $region130: #{normalizing_flow_model_forward.1} parent=76 // pred_fallthru
          _
      $region77: #{normalizing_flow_model_forward.1} parent=5 // pred_fallthru
        _
      %p1729 = scmp.le.s32.totalorder 2, %s20
      // Predicated region
      $region131: #{normalizing_flow_model_forward.1} parent=5 // pred_check
        %p1730 = pneg %p1729
      $region132: #{normalizing_flow_model_forward.1} parent=5 // pred_check_branch
        %1732 = sbr.rel (%p1730) target = $region134
      $region133: #{normalizing_flow_model_forward.1} parent=5 // pred_region
        %s1733 = ssub.s32 %s20, 2
        // Predicated region
        $region135: #{normalizing_flow_model_forward.1} parent=133 // pred_check
          %p1734 = pneg %p159
        $region136: #{normalizing_flow_model_forward.1} parent=133 // pred_check_branch
          %1736 = sbr.rel (%p1734) target = $region138
        $region137: #{normalizing_flow_model_forward.1} parent=133 // pred_region
          %s1737 = sand.u32 %s144, 1
          %s1738 = sand.u32 %s144, 1
          %s1739 = smul.addr %s1738, 32
          %s1740 = scalar_lea.vmem [#allocation3], %s1739
        $region138: #{normalizing_flow_model_forward.1} parent=133 // pred_fallthru
          _
        // Predicated region
        $region139: #{normalizing_flow_model_forward.1} parent=133 // pred_check
          %p1741 = pneg %p185
        $region140: #{normalizing_flow_model_forward.1} parent=133 // pred_check_branch
          %1743 = sbr.rel (%p1741) target = $region142
        $region141: #{normalizing_flow_model_forward.1} parent=133 // pred_region
          %s1744 = sand.u32 %s170, 1
          %s1745 = scalar_lea.sflag [#allocation5], %s1744
          %s1746 = sand.u32 %s170, 1
          %s1747 = scalar_lea.vmem [#allocation4], %s1746
          %1748 = dma.done %s1745, 16
        $region142: #{normalizing_flow_model_forward.1} parent=133 // pred_fallthru
          _
        // Predicated region
        $region143: #{normalizing_flow_model_forward.1} parent=133 // pred_check
          %p1749 = pneg %p211
        $region144: #{normalizing_flow_model_forward.1} parent=133 // pred_check_branch
          %1751 = sbr.rel (%p1749) target = $region146
        $region145: #{normalizing_flow_model_forward.1} parent=133 // pred_region
          %s1752 = sand.u32 %s196, 1
          %s1753 = scalar_lea.sflag [#allocation7], %s1752
          %s1754 = sand.u32 %s196, 1
          %s1755 = scalar_lea.vmem [#allocation6], %s1754
          %1756 = dma.done %s1753, 16
        $region146: #{normalizing_flow_model_forward.1} parent=133 // pred_fallthru
          _
      $region134: #{normalizing_flow_model_forward.1} parent=5 // pred_fallthru
        _
    $region6: #{normalizing_flow_model_forward.1} parent=1 // loop_footer
      %s24 = sadd.s32 1, %s20
    $region7: #{normalizing_flow_model_forward.1} parent=1 // loop_footer_branch
      %19 = sbr.rel target = $region3
    $region8: #{normalizing_flow_model_forward.1} parent=1 // loop_exit
      _
    %1757 = vsyncpa [#allocation5], 1
    %s1758 = scalar_lea.sflag [#allocation5], 1
    %1759 = vsyncpa %s1758, 1
    %1760 = vsyncpa [#allocation7], 1
    %s1761 = scalar_lea.sflag [#allocation7], 1
    %1762 = vsyncpa %s1761, 1

</llo_original>
